<compile_context>
chip_gen: v7x
topology: tpu7x:2x2x1
jax: 0.10.0
libtpu: 0.0.40
codegen_flags: <defaults>
</compile_context>

<pallas_src>
import functools

import jax
import jax.numpy as jnp
from jax.experimental import pallas as pl
from jax.experimental.pallas import tpu as pltpu

BN_EPS = 1e-5                        # nn.BatchNorm2d default eps
LANE = 128                           # pad K / OC to lane width
VMEM_LIMIT = 48 * 1024 * 1024        # scoped-VMEM cap: safe on v5e/v6e (128 MiB) and v7x (64 MiB)
VMEM_BLOCK_BUDGET = 20 * 1024 * 1024  # budget for resident / double-buffered blocks


# ----------------------------- small helpers ------------------------------- #
def _round_up(x, m):
    return (x + m - 1) // m * m


def _pad2d(a, rows, cols):
    r, c = a.shape
    return jnp.pad(a, ((0, rows - r), (0, cols - c)))


def _pad_vec(v, n):
    return jnp.pad(v.reshape(1, -1).astype(jnp.float32), ((0, 0), (0, n - v.shape[0])))


def _repack_weight(w_oihw):
    # (OC, IC, KH, KW) -> (KH*KW*IC, OC), matching the im2col column ordering.
    oc, ic, kh, kw = w_oihw.shape
    return jnp.transpose(w_oihw, (2, 3, 1, 0)).reshape(kh * kw * ic, oc).astype(jnp.float32)


def _im2col_nhwc(x_nhwc, kh, kw, stride, padding, dilation):
    """Extract conv patches. Returns (N*OH*OW, KH*KW*C), OH, OW."""
    n, h, w, c = x_nhwc.shape
    oh = (h + 2 * padding - dilation * (kh - 1) - 1) // stride + 1
    ow = (w + 2 * padding - dilation * (kw - 1) - 1) // stride + 1
    x_pad = jnp.pad(x_nhwc, ((0, 0), (padding, padding), (padding, padding), (0, 0)))
    cols = []
    for i in range(kh):
        for j in range(kw):
            r0 = i * dilation
            c0 = j * dilation
            patch = x_pad[:, r0:r0 + stride * (oh - 1) + 1:stride,
                             c0:c0 + stride * (ow - 1) + 1:stride, :]   # (N,OH,OW,C)
            cols.append(patch)
    patches = jnp.stack(cols, axis=3)                                   # (N,OH,OW,KH*KW,C)
    return patches.reshape(n * oh * ow, kh * kw * c), oh, ow


def _fits_single_call(m_rows, k_pad, oc_pad):
    # Whole-problem footprint of the fused single-call block kernel.
    bytes_needed = (m_rows * k_pad * 2            # patches (bf16)
                    + k_pad * oc_pad * 2          # weights (bf16)
                    + m_rows * oc_pad * (4 + 4 + 4 + 2))  # y(f32) + temps + residual + out
    return bytes_needed <= VMEM_BLOCK_BUDGET


def _choose_tm(m_rows, k_pad, oc_pad, budget=VMEM_BLOCK_BUDGET):
    # Biggest tile whose double-buffered footprint fits the VMEM budget.  A
    # single-step grid is fine (pipelining cannot hide anything at 1-2 steps).
    cap = max(256, _round_up(m_rows, 256))
    for tm in (4096, 2048, 1024, 512, 256):
        if tm > cap:
            continue
        footprint = (2 * tm * k_pad * 2          # patches tile (bf16, double-buffered)
                     + 2 * tm * oc_pad * 2       # y tile out (bf16, double-buffered)
                     + 2 * k_pad * oc_pad * 2    # weights
                     + 8 * oc_pad * 4)           # BN vectors / scratch
        if footprint <= budget:
            return tm
    return 256


def _fold_bn(sum_vec, sq_vec, gamma, beta, inv_m):
    # Biased batch statistics -> per-channel affine (scale, shift).
    mean = sum_vec * inv_m
    var = jnp.maximum(sq_vec * inv_m - mean * mean, 0.0)
    inv_std = jax.lax.rsqrt(var + BN_EPS)
    scale = gamma * inv_std
    shift = beta - mean * scale
    return scale, shift


# ------------------- fast path: one pallas_call per block ------------------- #
def _fused_block_kernel(p_ref, w_ref, g_ref, b_ref, a_ref, *, inv_m):
    """conv matmul + BN batch stats + BN apply + ReLU, whole block resident."""
    y = jnp.dot(p_ref[...], w_ref[...], preferred_element_type=jnp.float32)
    s = jnp.sum(y, axis=0, keepdims=True)
    sq = jnp.sum(y * y, axis=0, keepdims=True)
    scale, shift = _fold_bn(s, sq, g_ref[...], b_ref[...], inv_m)
    a_ref[...] = jnp.maximum(y * scale + shift, 0.0).astype(a_ref.dtype)


def _fused_block_residual_kernel(p_ref, w_ref, g_ref, b_ref, res_ref, o_ref, *, inv_m):
    """conv matmul + BN stats + BN apply + residual add + ReLU (final block)."""
    y = jnp.dot(p_ref[...], w_ref[...], preferred_element_type=jnp.float32)
    s = jnp.sum(y, axis=0, keepdims=True)
    sq = jnp.sum(y * y, axis=0, keepdims=True)
    scale, shift = _fold_bn(s, sq, g_ref[...], b_ref[...], inv_m)
    o_ref[...] = jnp.maximum(y * scale + shift + res_ref[...], 0.0)


def _fused_conv_bn_block(p, w, gamma, beta, m_rows, residual=None):
    m, k_pad = p.shape
    oc_pad = w.shape[1]
    inv_m = 1.0 / float(m_rows)
    ptile = pl.BlockSpec((m, k_pad), lambda i: (0, 0))
    wtile = pl.BlockSpec((k_pad, oc_pad), lambda i: (0, 0))
    vec = pl.BlockSpec((1, oc_pad), lambda i: (0, 0))
    otile = pl.BlockSpec((m, oc_pad), lambda i: (0, 0))
    if residual is None:
        kernel = functools.partial(_fused_block_kernel, inv_m=inv_m)
        in_specs = [ptile, wtile, vec, vec]
        args = (p, w, gamma, beta)
        out_dtype = jnp.bfloat16
    else:
        kernel = functools.partial(_fused_block_residual_kernel, inv_m=inv_m)
        in_specs = [ptile, wtile, vec, vec, otile]
        args = (p, w, gamma, beta, residual)
        out_dtype = jnp.float32
    return pl.pallas_call(
        kernel,
        out_shape=jax.ShapeDtypeStruct((m, oc_pad), out_dtype),
        grid_spec=pltpu.PrefetchScalarGridSpec(
            num_scalar_prefetch=0, grid=(1,),
            in_specs=in_specs, out_specs=otile),
        compiler_params=pltpu.CompilerParams(
            dimension_semantics=("arbitrary",), vmem_limit_bytes=VMEM_LIMIT),
    )(*args)


# -------------------- general tiled path (large problems) ------------------- #
def _conv_stats_kernel(p_ref, w_ref, g_ref, b_ref, y_ref, scale_ref, shift_ref,
                       sum_ref, sq_ref, *, inv_m):
    """Pass 1: conv matmul per M-tile + per-channel BN statistics (bf16 y out)."""
    i = pl.program_id(0)

    @pl.when(i == 0)
    def _init():
        sum_ref[...] = jnp.zeros_like(sum_ref)
        sq_ref[...] = jnp.zeros_like(sq_ref)

    y = jnp.dot(p_ref[...], w_ref[...], preferred_element_type=jnp.float32)
    y_ref[...] = y.astype(y_ref.dtype)           # bf16 store: halves HBM traffic
    sum_ref[...] += jnp.sum(y, axis=0, keepdims=True)
    sq_ref[...] += jnp.sum(y * y, axis=0, keepdims=True)

    @pl.when(i == pl.num_programs(0) - 1)
    def _finalize():
        scale, shift = _fold_bn(sum_ref[...], sq_ref[...], g_ref[...], b_ref[...], inv_m)
        scale_ref[...] = scale
        shift_ref[...] = shift


def _bn_relu_kernel(y_ref, scale_ref, shift_ref, a_ref):
    """Pass 2: BN apply + ReLU, bf16 activation out."""
    a = y_ref[...].astype(jnp.float32) * scale_ref[...] + shift_ref[...]
    a_ref[...] = jnp.maximum(a, 0.0).astype(a_ref.dtype)


def _bn_relu_conv_stats_kernel(yprev_ref, sprev_ref, tprev_ref, w_ref, g_ref, b_ref,
                               y_ref, scale_ref, shift_ref, sum_ref, sq_ref,
                               *, inv_m, m_rows, tm):
    """Fuses the previous block's BN+ReLU apply into this 1x1-conv stats pass."""
    i = pl.program_id(0)

    @pl.when(i == 0)
    def _init():
        sum_ref[...] = jnp.zeros_like(sum_ref)
        sq_ref[...] = jnp.zeros_like(sq_ref)

    a = jnp.maximum(yprev_ref[...].astype(jnp.float32) * sprev_ref[...] + tprev_ref[...], 0.0)
    if m_rows % tm != 0:
        # Zero padded tail rows so they do not pollute the BN statistics.
        row = i * tm + jax.lax.broadcasted_iota(jnp.int32, a.shape, 0)
        a = jnp.where(row < m_rows, a, 0.0)
    y = jnp.dot(a.astype(jnp.bfloat16), w_ref[...], preferred_element_type=jnp.float32)
    y_ref[...] = y.astype(y_ref.dtype)
    sum_ref[...] += jnp.sum(y, axis=0, keepdims=True)
    sq_ref[...] += jnp.sum(y * y, axis=0, keepdims=True)

    @pl.when(i == pl.num_programs(0) - 1)
    def _finalize():
        scale, shift = _fold_bn(sum_ref[...], sq_ref[...], g_ref[...], b_ref[...], inv_m)
        scale_ref[...] = scale
        shift_ref[...] = shift


def _bn_res_relu_kernel(y_ref, scale_ref, shift_ref, res_ref, o_ref):
    """Final pass: BN apply + residual add + ReLU (f32 out)."""
    o = y_ref[...].astype(jnp.float32) * scale_ref[...] + shift_ref[...] + res_ref[...]
    o_ref[...] = jnp.maximum(o, 0.0)


def _conv_bn_stats(p, w, gamma, beta, m_rows, tm):
    m_pad, k_pad = p.shape
    oc_pad = w.shape[1]
    kernel = functools.partial(_conv_stats_kernel, inv_m=1.0 / float(m_rows))
    vec = pl.BlockSpec((1, oc_pad), lambda i: (0, 0))
    return pl.pallas_call(
        kernel,
        out_shape=(jax.ShapeDtypeStruct((m_pad, oc_pad), jnp.bfloat16),
                   jax.ShapeDtypeStruct((1, oc_pad), jnp.float32),
                   jax.ShapeDtypeStruct((1, oc_pad), jnp.float32)),
        grid_spec=pltpu.PrefetchScalarGridSpec(
            num_scalar_prefetch=0, grid=(m_pad // tm,),
            in_specs=[pl.BlockSpec((tm, k_pad), lambda i: (i, 0)),
                      pl.BlockSpec((k_pad, oc_pad), lambda i: (0, 0)),
                      vec, vec],
            out_specs=(pl.BlockSpec((tm, oc_pad), lambda i: (i, 0)), vec, vec),
            scratch_shapes=[pltpu.VMEM((1, oc_pad), jnp.float32),
                            pltpu.VMEM((1, oc_pad), jnp.float32)]),
        compiler_params=pltpu.CompilerParams(
            dimension_semantics=("arbitrary",), vmem_limit_bytes=VMEM_LIMIT),
    )(p, w, gamma, beta)


def _bn_relu(y, scale, shift, tm):
    m_pad, oc_pad = y.shape
    tile = pl.BlockSpec((tm, oc_pad), lambda i: (i, 0))
    vec = pl.BlockSpec((1, oc_pad), lambda i: (0, 0))
    return pl.pallas_call(
        _bn_relu_kernel,
        out_shape=jax.ShapeDtypeStruct((m_pad, oc_pad), jnp.bfloat16),
        grid_spec=pltpu.PrefetchScalarGridSpec(
            num_scalar_prefetch=0, grid=(m_pad // tm,),
            in_specs=[tile, vec, vec], out_specs=tile),
        compiler_params=pltpu.CompilerParams(
            dimension_semantics=("parallel",), vmem_limit_bytes=VMEM_LIMIT),
    )(y, scale, shift)


def _fused_bn_relu_conv_stats(y_prev, s_prev, t_prev, w, gamma, beta, m_rows, tm):
    m_pad, k_pad = y_prev.shape
    oc_pad = w.shape[1]
    kernel = functools.partial(_bn_relu_conv_stats_kernel,
                               inv_m=1.0 / float(m_rows), m_rows=m_rows, tm=tm)
    ptile = pl.BlockSpec((tm, k_pad), lambda i: (i, 0))
    pvec = pl.BlockSpec((1, k_pad), lambda i: (0, 0))
    ovec = pl.BlockSpec((1, oc_pad), lambda i: (0, 0))
    return pl.pallas_call(
        kernel,
        out_shape=(jax.ShapeDtypeStruct((m_pad, oc_pad), jnp.bfloat16),
                   jax.ShapeDtypeStruct((1, oc_pad), jnp.float32),
                   jax.ShapeDtypeStruct((1, oc_pad), jnp.float32)),
        grid_spec=pltpu.PrefetchScalarGridSpec(
            num_scalar_prefetch=0, grid=(m_pad // tm,),
            in_specs=[ptile, pvec, pvec,
                      pl.BlockSpec((k_pad, oc_pad), lambda i: (0, 0)),
                      ovec, ovec],
            out_specs=(pl.BlockSpec((tm, oc_pad), lambda i: (i, 0)), ovec, ovec),
            scratch_shapes=[pltpu.VMEM((1, oc_pad), jnp.float32),
                            pltpu.VMEM((1, oc_pad), jnp.float32)]),
        compiler_params=pltpu.CompilerParams(
            dimension_semantics=("arbitrary",), vmem_limit_bytes=VMEM_LIMIT),
    )(y_prev, s_prev, t_prev, w, gamma, beta)


def _bn_res_relu(y, scale, shift, residual, tm):
    m_pad, oc_pad = y.shape
    tile = pl.BlockSpec((tm, oc_pad), lambda i: (i, 0))
    vec = pl.BlockSpec((1, oc_pad), lambda i: (0, 0))
    return pl.pallas_call(
        _bn_res_relu_kernel,
        out_shape=jax.ShapeDtypeStruct((m_pad, oc_pad), jnp.float32),
        grid_spec=pltpu.PrefetchScalarGridSpec(
            num_scalar_prefetch=0, grid=(m_pad // tm,),
            in_specs=[tile, vec, vec, tile], out_specs=tile),
        compiler_params=pltpu.CompilerParams(
            dimension_semantics=("parallel",), vmem_limit_bytes=VMEM_LIMIT),
    )(y, scale, shift, residual)


# ------------------------------ full forward -------------------------------- #
def bottleneck_identify_psp(x_nchw, params, *, dilation, force_tiled=False, tile_m=None):
    """BottleNeckIdentifyPSP forward (training-mode BN), Pallas-fused."""
    n, ic, h, w = x_nchw.shape
    mid = params["w1"].shape[0]
    m_rows = n * h * w
    ic_pad = _round_up(ic, LANE)
    mid_pad = _round_up(mid, LANE)
    k2_pad = _round_up(9 * mid, LANE)
    k_max = max(ic_pad, k2_pad, mid_pad)
    oc_max = max(mid_pad, ic_pad)

    x_nhwc = jnp.transpose(x_nchw, (0, 2, 3, 1)).astype(jnp.float32)
    x_flat = x_nhwc.reshape(m_rows, ic)

    w1 = _pad2d(_repack_weight(params["w1"]), ic_pad, mid_pad).astype(jnp.bfloat16)
    w2 = _pad2d(_repack_weight(params["w2"]), k2_pad, mid_pad).astype(jnp.bfloat16)
    w3 = _pad2d(_repack_weight(params["w3"]), mid_pad, ic_pad).astype(jnp.bfloat16)
    g1, b1 = _pad_vec(params["g1"], mid_pad), _pad_vec(params["b1"], mid_pad)
    g2, b2 = _pad_vec(params["g2"], mid_pad), _pad_vec(params["b2"], mid_pad)
    g3, b3 = _pad_vec(params["g3"], ic_pad), _pad_vec(params["b3"], ic_pad)

    use_fused = (not force_tiled) and _fits_single_call(m_rows, k_max, oc_max)

    if use_fused:
        # 3 pallas_calls total; no y / activation HBM round-trips, no M padding.
        p1 = _pad2d(x_flat, m_rows, ic_pad).astype(jnp.bfloat16)
        a1 = _fused_conv_bn_block(p1, w1, g1, b1, m_rows)              # (M, mid_pad) bf16
        a1_nhwc = a1[:, :mid].reshape(n, h, w, mid)
        p2, oh, ow = _im2col_nhwc(a1_nhwc, 3, 3, 1, dilation, dilation)
        assert (oh, ow) == (h, w)
        p2 = _pad2d(p2, m_rows, k2_pad)                                # bf16 already
        a2 = _fused_conv_bn_block(p2, w2, g2, b2, m_rows)              # (M, mid_pad) bf16
        residual = _pad2d(x_flat, m_rows, ic_pad)                      # f32
        out_flat = _fused_conv_bn_block(a2, w3, g3, b3, m_rows, residual=residual)
        out = out_flat[:, :ic].reshape(n, h, w, ic)
        return jnp.transpose(out, (0, 3, 1, 2))

    # General tiled path: 5 pallas_calls, bf16 intermediates, VMEM-aware tiles.
    tm = tile_m if tile_m is not None else _choose_tm(m_rows, k_max, oc_max)
    m_pad = _round_up(m_rows, tm)

    p1 = _pad2d(x_flat, m_pad, ic_pad).astype(jnp.bfloat16)
    y1, s1, t1 = _conv_bn_stats(p1, w1, g1, b1, m_rows, tm)
    a1 = _bn_relu(y1, s1, t1, tm)                                      # bf16

    a1_nhwc = a1[:m_rows, :mid].reshape(n, h, w, mid)
    p2, oh, ow = _im2col_nhwc(a1_nhwc, 3, 3, 1, dilation, dilation)
    assert (oh, ow) == (h, w)
    p2 = _pad2d(p2, m_pad, k2_pad)
    y2, s2, t2 = _conv_bn_stats(p2, w2, g2, b2, m_rows, tm)

    # cb_3: BN2+ReLU apply fused into the 1x1-conv stats pass (no a2 round-trip).
    y3, s3, t3 = _fused_bn_relu_conv_stats(y2, s2, t2, w3, g3, b3, m_rows, tm)

    residual = _pad2d(x_flat, m_pad, ic_pad)                           # f32
    out_flat = _bn_res_relu(y3, s3, t3, residual, tm)
    out = out_flat[:m_rows, :ic].reshape(n, h, w, ic)
    return jnp.transpose(out, (0, 3, 1, 2))


# ----------------------------- reference (pure JAX) -------------------------- #
def _ref_conv_bn(x_nchw, w_oihw, gamma, beta, *, padding, dilation, relu, round_y):
    # Mirrors the kernels' mixed-precision policy: bf16 matmul operands with f32
    # accumulation; BN statistics always from the f32 conv output.  round_y=True
    # additionally mirrors the tiled path's bf16 storage of the raw conv output.
    y = jax.lax.conv_general_dilated(
        x_nchw.astype(jnp.bfloat16), w_oihw.astype(jnp.bfloat16),
        window_strides=(1, 1),
        padding=((padding, padding), (padding, padding)),
        rhs_dilation=(dilation, dilation),
        dimension_numbers=("NCHW", "OIHW", "NCHW"),
        preferred_element_type=jnp.float32)
    mean = jnp.mean(y, axis=(0, 2, 3), keepdims=True)
    var = jnp.mean((y - mean) ** 2, axis=(0, 2, 3), keepdims=True)     # biased
    y_n = y.astype(jnp.bfloat16).astype(jnp.float32) if round_y else y
    out = ((y_n - mean) * jax.lax.rsqrt(var + BN_EPS) * gamma.reshape(1, -1, 1, 1)
           + beta.reshape(1, -1, 1, 1))
    return jnp.maximum(out, 0.0) if relu else out


def _reference(x, params, *, dilation, round_y=False):
    a1 = _ref_conv_bn(x, params["w1"], params["g1"], params["b1"],
                      padding=0, dilation=1, relu=True, round_y=round_y)
    a2 = _ref_conv_bn(a1, params["w2"], params["g2"], params["b2"],
                      padding=dilation, dilation=dilation, relu=True, round_y=round_y)
    y3 = _ref_conv_bn(a2, params["w3"], params["g3"], params["b3"],
                      padding=0, dilation=1, relu=False, round_y=round_y)
    return jnp.maximum(y3 + x, 0.0)


# ------------------------------------ main ----------------------------------- #
if __name__ == "__main__":
    # BottleNeckIdentifyPSP(in_channels=16, mid_channels=8, stride=1, dilation=2)
    # NOTE: the module's `stride` argument is unused inside the identity block.
    N, IC, MID, H, W = 2, 16, 8, 16, 16
    DIL = 2

    key = jax.random.PRNGKey(0)
    ks = jax.random.split(key, 10)
    x = jax.random.normal(ks[0], (N, IC, H, W), dtype=jnp.float32)
    params = {
        "w1": jax.random.normal(ks[1], (MID, IC, 1, 1), dtype=jnp.float32) * 0.1,
        "g1": 1.0 + 0.1 * jax.random.normal(ks[2], (MID,), dtype=jnp.float32),
        "b1": 0.1 * jax.random.normal(ks[3], (MID,), dtype=jnp.float32),
        "w2": jax.random.normal(ks[4], (MID, MID, 3, 3), dtype=jnp.float32) * 0.1,
        "g2": 1.0 + 0.1 * jax.random.normal(ks[5], (MID,), dtype=jnp.float32),
        "b2": 0.1 * jax.random.normal(ks[6], (MID,), dtype=jnp.float32),
        "w3": jax.random.normal(ks[7], (IC, MID, 1, 1), dtype=jnp.float32) * 0.1,
        "g3": 1.0 + 0.1 * jax.random.normal(ks[8], (IC,), dtype=jnp.float32),
        "b3": 0.1 * jax.random.normal(ks[9], (IC,), dtype=jnp.float32),
    }

    # Fast (fully fused, 3-call) path — picked automatically at this shape.
    fwd = jax.jit(functools.partial(bottleneck_identify_psp, dilation=DIL))
    out = jax.block_until_ready(fwd(x, params))
    assert out.shape == (N, IC, H, W), out.shape
    ref = _reference(x, params, dilation=DIL, round_y=False)
    max_err = float(jnp.max(jnp.abs(out - ref)))
    assert jnp.allclose(out, ref, atol=2e-3, rtol=2e-3), max_err

    # Also exercise the general tiled path (bf16 intermediate storage, 2-step
    # stats accumulation) and validate it against the matching-precision ref.
    fwd_tiled = jax.jit(functools.partial(bottleneck_identify_psp, dilation=DIL,
                                          force_tiled=True, tile_m=256))
    out_t = jax.block_until_ready(fwd_tiled(x, params))
    ref_t = _reference(x, params, dilation=DIL, round_y=True)
    max_err_t = float(jnp.max(jnp.abs(out_t - ref_t)))
    assert jnp.allclose(out_t, ref_t, atol=2e-2, rtol=2e-2), max_err_t

    print("KERNEL_OK")
</pallas_src>

<mosaic_0001>
module attributes {stable_mosaic.version = 11 : i64} {
  func.func @_fused_block_kernel(%arg0: i32, %arg1: memref<512x128xbf16, #tpu.memory_space<vmem>>, %arg2: memref<128x128xbf16, #tpu.memory_space<vmem>>, %arg3: memref<1x128xf32, #tpu.memory_space<vmem>>, %arg4: memref<1x128xf32, #tpu.memory_space<vmem>>, %arg5: memref<512x128xbf16, #tpu.memory_space<vmem>>) attributes {dimension_semantics = [#tpu.dimension_semantics<arbitrary>], iteration_bounds = array<i64: 1>, scalar_prefetch = 0 : i64, scratch_operands = 0 : i64, tpu.core_type = #tpu.core_type<tc>, window_params = [{pipeline_mode = #tpu.pipeline_mode<synchronous>, transform_indices = @transform_0, window_bounds = array<i64: 512, 128>}, {pipeline_mode = #tpu.pipeline_mode<synchronous>, transform_indices = @transform_1, window_bounds = array<i64: 128, 128>}, {pipeline_mode = #tpu.pipeline_mode<synchronous>, transform_indices = @transform_2, window_bounds = array<i64: 1, 128>}, {pipeline_mode = #tpu.pipeline_mode<synchronous>, transform_indices = @transform_3, window_bounds = array<i64: 1, 128>}, {pipeline_mode = #tpu.pipeline_mode<synchronous>, transform_indices = @transform_4, window_bounds = array<i64: 512, 128>}]} {
    %c0 = arith.constant 0 : index
    %c0_0 = arith.constant 0 : index
    %0 = vector.load %arg1[%c0, %c0_0] : memref<512x128xbf16, #tpu.memory_space<vmem>>, vector<512x128xbf16>
    %c0_1 = arith.constant 0 : index
    %c0_2 = arith.constant 0 : index
    %1 = vector.load %arg2[%c0_1, %c0_2] : memref<128x128xbf16, #tpu.memory_space<vmem>>, vector<128x128xbf16>
    %cst = arith.constant dense<0.000000e+00> : vector<512x128xf32>
    %2 = tpu.matmul %0, %1, %cst {dimension_numbers = #tpu.dot_dimension_numbers<[1], [0], [0], [1], [0, 0, 1, 1], [], []>} : vector<512x128xbf16>, vector<128x128xbf16>, vector<512x128xf32> -> vector<512x128xf32>
    %cst_3 = arith.constant dense<0.000000e+00> : vector<128xf32>
    %3 = vector.multi_reduction <add>, %2, %cst_3 [0] : vector<512x128xf32> to vector<128xf32>
    %4 = vector.shape_cast %3 : vector<128xf32> to vector<1x128xf32>
    %5 = arith.mulf %2, %2 : vector<512x128xf32>
    %cst_4 = arith.constant dense<0.000000e+00> : vector<128xf32>
    %6 = vector.multi_reduction <add>, %5, %cst_4 [0] : vector<512x128xf32> to vector<128xf32>
    %7 = vector.shape_cast %6 : vector<128xf32> to vector<1x128xf32>
    %c0_5 = arith.constant 0 : index
    %c0_6 = arith.constant 0 : index
    %8 = vector.load %arg3[%c0_5, %c0_6] : memref<1x128xf32, #tpu.memory_space<vmem>>, vector<1x128xf32>
    %c0_7 = arith.constant 0 : index
    %c0_8 = arith.constant 0 : index
    %9 = vector.load %arg4[%c0_7, %c0_8] : memref<1x128xf32, #tpu.memory_space<vmem>>, vector<1x128xf32>
    %cst_9 = arith.constant 0.001953125 : f32
    %10 = vector.broadcast %cst_9 : f32 to vector<1x128xf32>
    %11 = arith.mulf %4, %10 : vector<1x128xf32>
    %cst_10 = arith.constant 0.001953125 : f32
    %12 = vector.broadcast %cst_10 : f32 to vector<1x128xf32>
    %13 = arith.mulf %7, %12 : vector<1x128xf32>
    %14 = arith.mulf %11, %11 : vector<1x128xf32>
    %15 = arith.subf %13, %14 : vector<1x128xf32>
    %cst_11 = arith.constant 0.000000e+00 : f32
    %16 = vector.broadcast %cst_11 : f32 to vector<1x128xf32>
    %17 = arith.maximumf %15, %16 : vector<1x128xf32>
    %cst_12 = arith.constant 9.99999974E-6 : f32
    %18 = vector.broadcast %cst_12 : f32 to vector<1x128xf32>
    %19 = arith.addf %17, %18 : vector<1x128xf32>
    %20 = math.rsqrt %19 : vector<1x128xf32>
    %21 = arith.mulf %8, %20 : vector<1x128xf32>
    %22 = arith.mulf %11, %21 : vector<1x128xf32>
    %23 = arith.subf %9, %22 : vector<1x128xf32>
    %24 = vector.broadcast %21 : vector<1x128xf32> to vector<512x128xf32>
    %25 = arith.mulf %2, %24 : vector<512x128xf32>
    %26 = vector.broadcast %23 : vector<1x128xf32> to vector<512x128xf32>
    %27 = arith.addf %25, %26 : vector<512x128xf32>
    %cst_13 = arith.constant 0.000000e+00 : f32
    %28 = vector.broadcast %cst_13 : f32 to vector<512x128xf32>
    %29 = arith.maximumf %27, %28 : vector<512x128xf32>
    %30 = arith.truncf %29 : vector<512x128xf32> to vector<512x128xbf16>
    %c0_14 = arith.constant 0 : index
    %c0_15 = arith.constant 0 : index
    %31 = vector.load %arg5[%c0_14, %c0_15] : memref<512x128xbf16, #tpu.memory_space<vmem>>, vector<512x128xbf16>
    tpu.vector_store %arg5[%c0_14, %c0_15], %30 {strides = array<i32>} : memref<512x128xbf16, #tpu.memory_space<vmem>>, vector<512x128xbf16>,
    return
  }
  func.func @transform_0(%arg0: i32) -> (i32, i32) {
    %c0_i32 = arith.constant 0 : i32
    %c0_i32_0 = arith.constant 0 : i32
    %c0_i32_1 = arith.constant 0 : i32
    return %c0_i32, %c0_i32_0 : i32, i32
  }
  func.func @transform_1(%arg0: i32) -> (i32, i32) {
    %c0_i32 = arith.constant 0 : i32
    %c0_i32_0 = arith.constant 0 : i32
    %c0_i32_1 = arith.constant 0 : i32
    return %c0_i32, %c0_i32_0 : i32, i32
  }
  func.func @transform_2(%arg0: i32) -> (i32, i32) {
    %c0_i32 = arith.constant 0 : i32
    %c0_i32_0 = arith.constant 0 : i32
    %c0_i32_1 = arith.constant 0 : i32
    return %c0_i32, %c0_i32_0 : i32, i32
  }
  func.func @transform_3(%arg0: i32) -> (i32, i32) {
    %c0_i32 = arith.constant 0 : i32
    %c0_i32_0 = arith.constant 0 : i32
    %c0_i32_1 = arith.constant 0 : i32
    return %c0_i32, %c0_i32_0 : i32, i32
  }
  func.func @transform_4(%arg0: i32) -> (i32, i32) {
    %c0_i32 = arith.constant 0 : i32
    %c0_i32_0 = arith.constant 0 : i32
    %c0_i32_1 = arith.constant 0 : i32
    return %c0_i32, %c0_i32_0 : i32, i32
  }
}

module attributes {stable_mosaic.version = 11 : i64} {
  func.func @_fused_block_residual_kernel(%arg0: i32, %arg1: memref<512x128xbf16, #tpu.memory_space<vmem>>, %arg2: memref<128x128xbf16, #tpu.memory_space<vmem>>, %arg3: memref<1x128xf32, #tpu.memory_space<vmem>>, %arg4: memref<1x128xf32, #tpu.memory_space<vmem>>, %arg5: memref<512x128xf32, #tpu.memory_space<vmem>>, %arg6: memref<512x128xf32, #tpu.memory_space<vmem>>) attributes {dimension_semantics = [#tpu.dimension_semantics<arbitrary>], iteration_bounds = array<i64: 1>, scalar_prefetch = 0 : i64, scratch_operands = 0 : i64, tpu.core_type = #tpu.core_type<tc>, window_params = [{pipeline_mode = #tpu.pipeline_mode<synchronous>, transform_indices = @transform_0, window_bounds = array<i64: 512, 128>}, {pipeline_mode = #tpu.pipeline_mode<synchronous>, transform_indices = @transform_1, window_bounds = array<i64: 128, 128>}, {pipeline_mode = #tpu.pipeline_mode<synchronous>, transform_indices = @transform_2, window_bounds = array<i64: 1, 128>}, {pipeline_mode = #tpu.pipeline_mode<synchronous>, transform_indices = @transform_3, window_bounds = array<i64: 1, 128>}, {pipeline_mode = #tpu.pipeline_mode<synchronous>, transform_indices = @transform_4, window_bounds = array<i64: 512, 128>}, {pipeline_mode = #tpu.pipeline_mode<synchronous>, transform_indices = @transform_5, window_bounds = array<i64: 512, 128>}]} {
    %c0 = arith.constant 0 : index
    %c0_0 = arith.constant 0 : index
    %0 = vector.load %arg1[%c0, %c0_0] : memref<512x128xbf16, #tpu.memory_space<vmem>>, vector<512x128xbf16>
    %c0_1 = arith.constant 0 : index
    %c0_2 = arith.constant 0 : index
    %1 = vector.load %arg2[%c0_1, %c0_2] : memref<128x128xbf16, #tpu.memory_space<vmem>>, vector<128x128xbf16>
    %cst = arith.constant dense<0.000000e+00> : vector<512x128xf32>
    %2 = tpu.matmul %0, %1, %cst {dimension_numbers = #tpu.dot_dimension_numbers<[1], [0], [0], [1], [0, 0, 1, 1], [], []>} : vector<512x128xbf16>, vector<128x128xbf16>, vector<512x128xf32> -> vector<512x128xf32>
    %cst_3 = arith.constant dense<0.000000e+00> : vector<128xf32>
    %3 = vector.multi_reduction <add>, %2, %cst_3 [0] : vector<512x128xf32> to vector<128xf32>
    %4 = vector.shape_cast %3 : vector<128xf32> to vector<1x128xf32>
    %5 = arith.mulf %2, %2 : vector<512x128xf32>
    %cst_4 = arith.constant dense<0.000000e+00> : vector<128xf32>
    %6 = vector.multi_reduction <add>, %5, %cst_4 [0] : vector<512x128xf32> to vector<128xf32>
    %7 = vector.shape_cast %6 : vector<128xf32> to vector<1x128xf32>
    %c0_5 = arith.constant 0 : index
    %c0_6 = arith.constant 0 : index
    %8 = vector.load %arg3[%c0_5, %c0_6] : memref<1x128xf32, #tpu.memory_space<vmem>>, vector<1x128xf32>
    %c0_7 = arith.constant 0 : index
    %c0_8 = arith.constant 0 : index
    %9 = vector.load %arg4[%c0_7, %c0_8] : memref<1x128xf32, #tpu.memory_space<vmem>>, vector<1x128xf32>
    %cst_9 = arith.constant 0.001953125 : f32
    %10 = vector.broadcast %cst_9 : f32 to vector<1x128xf32>
    %11 = arith.mulf %4, %10 : vector<1x128xf32>
    %cst_10 = arith.constant 0.001953125 : f32
    %12 = vector.broadcast %cst_10 : f32 to vector<1x128xf32>
    %13 = arith.mulf %7, %12 : vector<1x128xf32>
    %14 = arith.mulf %11, %11 : vector<1x128xf32>
    %15 = arith.subf %13, %14 : vector<1x128xf32>
    %cst_11 = arith.constant 0.000000e+00 : f32
    %16 = vector.broadcast %cst_11 : f32 to vector<1x128xf32>
    %17 = arith.maximumf %15, %16 : vector<1x128xf32>
    %cst_12 = arith.constant 9.99999974E-6 : f32
    %18 = vector.broadcast %cst_12 : f32 to vector<1x128xf32>
    %19 = arith.addf %17, %18 : vector<1x128xf32>
    %20 = math.rsqrt %19 : vector<1x128xf32>
    %21 = arith.mulf %8, %20 : vector<1x128xf32>
    %22 = arith.mulf %11, %21 : vector<1x128xf32>
    %23 = arith.subf %9, %22 : vector<1x128xf32>
    %24 = vector.broadcast %21 : vector<1x128xf32> to vector<512x128xf32>
    %25 = arith.mulf %2, %24 : vector<512x128xf32>
    %26 = vector.broadcast %23 : vector<1x128xf32> to vector<512x128xf32>
    %27 = arith.addf %25, %26 : vector<512x128xf32>
    %c0_13 = arith.constant 0 : index
    %c0_14 = arith.constant 0 : index
    %28 = vector.load %arg5[%c0_13, %c0_14] : memref<512x128xf32, #tpu.memory_space<vmem>>, vector<512x128xf32>
    %29 = arith.addf %27, %28 : vector<512x128xf32>
    %cst_15 = arith.constant 0.000000e+00 : f32
    %30 = vector.broadcast %cst_15 : f32 to vector<512x128xf32>
    %31 = arith.maximumf %29, %30 : vector<512x128xf32>
    %c0_16 = arith.constant 0 : index
    %c0_17 = arith.constant 0 : index
    %32 = vector.load %arg6[%c0_16, %c0_17] : memref<512x128xf32, #tpu.memory_space<vmem>>, vector<512x128xf32>
    tpu.vector_store %arg6[%c0_16, %c0_17], %31 {strides = array<i32>} : memref<512x128xf32, #tpu.memory_space<vmem>>, vector<512x128xf32>,
    return
  }
  func.func @transform_0(%arg0: i32) -> (i32, i32) {
    %c0_i32 = arith.constant 0 : i32
    %c0_i32_0 = arith.constant 0 : i32
    %c0_i32_1 = arith.constant 0 : i32
    return %c0_i32, %c0_i32_0 : i32, i32
  }
  func.func @transform_1(%arg0: i32) -> (i32, i32) {
    %c0_i32 = arith.constant 0 : i32
    %c0_i32_0 = arith.constant 0 : i32
    %c0_i32_1 = arith.constant 0 : i32
    return %c0_i32, %c0_i32_0 : i32, i32
  }
  func.func @transform_2(%arg0: i32) -> (i32, i32) {
    %c0_i32 = arith.constant 0 : i32
    %c0_i32_0 = arith.constant 0 : i32
    %c0_i32_1 = arith.constant 0 : i32
    return %c0_i32, %c0_i32_0 : i32, i32
  }
  func.func @transform_3(%arg0: i32) -> (i32, i32) {
    %c0_i32 = arith.constant 0 : i32
    %c0_i32_0 = arith.constant 0 : i32
    %c0_i32_1 = arith.constant 0 : i32
    return %c0_i32, %c0_i32_0 : i32, i32
  }
  func.func @transform_4(%arg0: i32) -> (i32, i32) {
    %c0_i32 = arith.constant 0 : i32
    %c0_i32_0 = arith.constant 0 : i32
    %c0_i32_1 = arith.constant 0 : i32
    return %c0_i32, %c0_i32_0 : i32, i32
  }
  func.func @transform_5(%arg0: i32) -> (i32, i32) {
    %c0_i32 = arith.constant 0 : i32
    %c0_i32_0 = arith.constant 0 : i32
    %c0_i32_1 = arith.constant 0 : i32
    return %c0_i32, %c0_i32_0 : i32, i32
  }
}

</mosaic_0001>

<llo_original>
// kernel: bottleneck_identify_psp.3
$region0: #{bottleneck_identify_psp.3}
  #allocation0 [shape = 'u32[]', space=smem, size = 0x4, offset = 0x4, fixed_abs, tag = 'smem constant byte address 0x4 - core index']
  #allocation1 [shape = 'u32[144,128]{1,0:T(1,128)}', space=vmem, size = 0x12000, scoped, tag = 'internal scratch']
  %s0 = inlined_call_operand.vmem [shape: bf16[512,128], index: 0, kind: input, shape index: {}]
  %s1 = inlined_call_operand.vmem [shape: bf16[128,128], index: 1, kind: input, shape index: {}]
  %s2 = inlined_call_operand.vmem [shape: f32[1,128], index: 2, kind: input, shape index: {}]
  %s3 = inlined_call_operand.vmem [shape: f32[1,128], index: 3, kind: input, shape index: {}]
  %s4 = inlined_call_operand.vmem [shape: bf16[512,128], index: 4, kind: output, shape index: {}]
  %s5 = sld [smem:[#allocation0]]
  $region26: #{bottleneck_identify_psp.3} parent=0
    _
  %s7 = ssub.s32 1, %s5
  %s8 = scalar_select 0, %s7, %s5
  // Predicated region
  $region2: #{bottleneck_identify_psp.3} parent=0 // pred_check
    _
  $region3: #{bottleneck_identify_psp.3} parent=0 // pred_check_branch
    %10 = sbr.rel (0) target = $region5
  $region4: #{bottleneck_identify_psp.3} parent=0 // pred_region
    _
  $region5: #{bottleneck_identify_psp.3} parent=0 // pred_fallthru
    _
  // Predicated region
  $region6: #{bottleneck_identify_psp.3} parent=0 // pred_check
    _
  $region7: #{bottleneck_identify_psp.3} parent=0 // pred_check_branch
    %12 = sbr.rel (0) target = $region9
  $region8: #{bottleneck_identify_psp.3} parent=0 // pred_region
    _
  $region9: #{bottleneck_identify_psp.3} parent=0 // pred_fallthru
    _
  // Predicated region
  $region10: #{bottleneck_identify_psp.3} parent=0 // pred_check
    _
  $region11: #{bottleneck_identify_psp.3} parent=0 // pred_check_branch
    %14 = sbr.rel (0) target = $region13
  $region12: #{bottleneck_identify_psp.3} parent=0 // pred_region
    _
  $region13: #{bottleneck_identify_psp.3} parent=0 // pred_fallthru
    _
  // Predicated region
  $region14: #{bottleneck_identify_psp.3} parent=0 // pred_check
    _
  $region15: #{bottleneck_identify_psp.3} parent=0 // pred_check_branch
    %16 = sbr.rel (0) target = $region17
  $region16: #{bottleneck_identify_psp.3} parent=0 // pred_region
    _
  $region17: #{bottleneck_identify_psp.3} parent=0 // pred_fallthru
    _
  %v18 = vld [vmem:[%s0] sm:$0xf]
  %v19 = vld [vmem:[%s0 + $0x4] sm:$0xf]
  %v20 = vld [vmem:[%s0 + $0x8] sm:$0xf]
  %v21 = vld [vmem:[%s0 + $0xc] sm:$0xf]
  %v22 = vld [vmem:[%s0 + $0x10] sm:$0xf]
  %v23 = vld [vmem:[%s0 + $0x14] sm:$0xf]
  %v24 = vld [vmem:[%s0 + $0x18] sm:$0xf]
  %v25 = vld [vmem:[%s0 + $0x1c] sm:$0xf]
  %v26 = vld [vmem:[%s0 + $0x20] sm:$0xf]
  %v27 = vld [vmem:[%s0 + $0x24] sm:$0xf]
  %v28 = vld [vmem:[%s0 + $0x28] sm:$0xf]
  %v29 = vld [vmem:[%s0 + $0x2c] sm:$0xf]
  %v30 = vld [vmem:[%s0 + $0x30] sm:$0xf]
  %v31 = vld [vmem:[%s0 + $0x34] sm:$0xf]
  %v32 = vld [vmem:[%s0 + $0x38] sm:$0xf]
  %v33 = vld [vmem:[%s0 + $0x3c] sm:$0xf]
  %v34 = vld [vmem:[%s0 + $0x40] sm:$0xf]
  %v35 = vld [vmem:[%s0 + $0x44] sm:$0xf]
  %v36 = vld [vmem:[%s0 + $0x48] sm:$0xf]
  %v37 = vld [vmem:[%s0 + $0x4c] sm:$0xf]
  %v38 = vld [vmem:[%s0 + $0x50] sm:$0xf]
  %v39 = vld [vmem:[%s0 + $0x54] sm:$0xf]
  %v40 = vld [vmem:[%s0 + $0x58] sm:$0xf]
  %v41 = vld [vmem:[%s0 + $0x5c] sm:$0xf]
  %v42 = vld [vmem:[%s0 + $0x60] sm:$0xf]
  %v43 = vld [vmem:[%s0 + $0x64] sm:$0xf]
  %v44 = vld [vmem:[%s0 + $0x68] sm:$0xf]
  %v45 = vld [vmem:[%s0 + $0x6c] sm:$0xf]
  %v46 = vld [vmem:[%s0 + $0x70] sm:$0xf]
  %v47 = vld [vmem:[%s0 + $0x74] sm:$0xf]
  %v48 = vld [vmem:[%s0 + $0x78] sm:$0xf]
  %v49 = vld [vmem:[%s0 + $0x7c] sm:$0xf]
  %v50 = vld [vmem:[%s0 + $0x80] sm:$0xf]
  %v51 = vld [vmem:[%s0 + $0x84] sm:$0xf]
  %v52 = vld [vmem:[%s0 + $0x88] sm:$0xf]
  %v53 = vld [vmem:[%s0 + $0x8c] sm:$0xf]
  %v54 = vld [vmem:[%s0 + $0x90] sm:$0xf]
  %v55 = vld [vmem:[%s0 + $0x94] sm:$0xf]
  %v56 = vld [vmem:[%s0 + $0x98] sm:$0xf]
  %v57 = vld [vmem:[%s0 + $0x9c] sm:$0xf]
  %v58 = vld [vmem:[%s0 + $0xa0] sm:$0xf]
  %v59 = vld [vmem:[%s0 + $0xa4] sm:$0xf]
  %v60 = vld [vmem:[%s0 + $0xa8] sm:$0xf]
  %v61 = vld [vmem:[%s0 + $0xac] sm:$0xf]
  %v62 = vld [vmem:[%s0 + $0xb0] sm:$0xf]
  %v63 = vld [vmem:[%s0 + $0xb4] sm:$0xf]
  %v64 = vld [vmem:[%s0 + $0xb8] sm:$0xf]
  %v65 = vld [vmem:[%s0 + $0xbc] sm:$0xf]
  %v66 = vld [vmem:[%s0 + $0xc0] sm:$0xf]
  %v67 = vld [vmem:[%s0 + $0xc4] sm:$0xf]
  %v68 = vld [vmem:[%s0 + $0xc8] sm:$0xf]
  %v69 = vld [vmem:[%s0 + $0xcc] sm:$0xf]
  %v70 = vld [vmem:[%s0 + $0xd0] sm:$0xf]
  %v71 = vld [vmem:[%s0 + $0xd4] sm:$0xf]
  %v72 = vld [vmem:[%s0 + $0xd8] sm:$0xf]
  %v73 = vld [vmem:[%s0 + $0xdc] sm:$0xf]
  %v74 = vld [vmem:[%s0 + $0xe0] sm:$0xf]
  %v75 = vld [vmem:[%s0 + $0xe4] sm:$0xf]
  %v76 = vld [vmem:[%s0 + $0xe8] sm:$0xf]
  %v77 = vld [vmem:[%s0 + $0xec] sm:$0xf]
  %v78 = vld [vmem:[%s0 + $0xf0] sm:$0xf]
  %v79 = vld [vmem:[%s0 + $0xf4] sm:$0xf]
  %v80 = vld [vmem:[%s0 + $0xf8] sm:$0xf]
  %v81 = vld [vmem:[%s0 + $0xfc] sm:$0xf]
  %v82 = vld [vmem:[%s1] sm:$0xf]
  %v83 = vld [vmem:[%s1 + $0x4] sm:$0xf]
  %v84 = vld [vmem:[%s1 + $0x8] sm:$0xf]
  %v85 = vld [vmem:[%s1 + $0xc] sm:$0xf]
  %v86 = vld [vmem:[%s1 + $0x10] sm:$0xf]
  %v87 = vld [vmem:[%s1 + $0x14] sm:$0xf]
  %v88 = vld [vmem:[%s1 + $0x18] sm:$0xf]
  %v89 = vld [vmem:[%s1 + $0x1c] sm:$0xf]
  %v90 = vld [vmem:[%s1 + $0x20] sm:$0xf]
  %v91 = vld [vmem:[%s1 + $0x24] sm:$0xf]
  %v92 = vld [vmem:[%s1 + $0x28] sm:$0xf]
  %v93 = vld [vmem:[%s1 + $0x2c] sm:$0xf]
  %v94 = vld [vmem:[%s1 + $0x30] sm:$0xf]
  %v95 = vld [vmem:[%s1 + $0x34] sm:$0xf]
  %v96 = vld [vmem:[%s1 + $0x38] sm:$0xf]
  %v97 = vld [vmem:[%s1 + $0x3c] sm:$0xf]
  %v162 = vunpack.c.l.b16 %v18
  %v163 = vunpack.c.l.b16 %v19
  %v164 = vunpack.c.l.b16 %v20
  %v165 = vunpack.c.l.b16 %v21
  %v166 = vunpack.c.l.b16 %v22
  %v167 = vunpack.c.l.b16 %v23
  %v168 = vunpack.c.l.b16 %v24
  %v169 = vunpack.c.l.b16 %v25
  %v170 = vunpack.c.l.b16 %v26
  %v171 = vunpack.c.l.b16 %v27
  %v172 = vunpack.c.l.b16 %v28
  %v173 = vunpack.c.l.b16 %v29
  %v174 = vunpack.c.l.b16 %v30
  %v175 = vunpack.c.l.b16 %v31
  %v176 = vunpack.c.l.b16 %v32
  %v177 = vunpack.c.l.b16 %v33
  %v178 = vunpack.c.l.b16 %v34
  %v179 = vunpack.c.l.b16 %v35
  %v180 = vunpack.c.l.b16 %v36
  %v181 = vunpack.c.l.b16 %v37
  %v182 = vunpack.c.l.b16 %v38
  %v183 = vunpack.c.l.b16 %v39
  %v184 = vunpack.c.l.b16 %v40
  %v185 = vunpack.c.l.b16 %v41
  %v186 = vunpack.c.l.b16 %v42
  %v187 = vunpack.c.l.b16 %v43
  %v188 = vunpack.c.l.b16 %v44
  %v189 = vunpack.c.l.b16 %v45
  %v190 = vunpack.c.l.b16 %v46
  %v191 = vunpack.c.l.b16 %v47
  %v192 = vunpack.c.l.b16 %v48
  %v193 = vunpack.c.l.b16 %v49
  %v194 = vunpack.c.l.b16 %v50
  %v195 = vunpack.c.l.b16 %v51
  %v196 = vunpack.c.l.b16 %v52
  %v197 = vunpack.c.l.b16 %v53
  %v198 = vunpack.c.l.b16 %v54
  %v199 = vunpack.c.l.b16 %v55
  %v200 = vunpack.c.l.b16 %v56
  %v201 = vunpack.c.l.b16 %v57
  %v202 = vunpack.c.l.b16 %v58
  %v203 = vunpack.c.l.b16 %v59
  %v204 = vunpack.c.l.b16 %v60
  %v205 = vunpack.c.l.b16 %v61
  %v206 = vunpack.c.l.b16 %v62
  %v207 = vunpack.c.l.b16 %v63
  %v208 = vunpack.c.l.b16 %v64
  %v209 = vunpack.c.l.b16 %v65
  %v210 = vunpack.c.l.b16 %v66
  %v211 = vunpack.c.l.b16 %v67
  %v212 = vunpack.c.l.b16 %v68
  %v213 = vunpack.c.l.b16 %v69
  %v214 = vunpack.c.l.b16 %v70
  %v215 = vunpack.c.l.b16 %v71
  %v216 = vunpack.c.l.b16 %v72
  %v217 = vunpack.c.l.b16 %v73
  %v218 = vunpack.c.l.b16 %v74
  %v219 = vunpack.c.l.b16 %v75
  %v220 = vunpack.c.l.b16 %v76
  %v221 = vunpack.c.l.b16 %v77
  %v222 = vunpack.c.l.b16 %v78
  %v223 = vunpack.c.l.b16 %v79
  %v224 = vunpack.c.l.b16 %v80
  %v225 = vunpack.c.l.b16 %v81
  %v226 = vpack.c.b16 %v163, %v162
  %v227 = vpack.c.b16 %v165, %v164
  %v228 = vpack.c.b16 %v167, %v166
  %v229 = vpack.c.b16 %v169, %v168
  %v230 = vpack.c.b16 %v171, %v170
  %v231 = vpack.c.b16 %v173, %v172
  %v232 = vpack.c.b16 %v175, %v174
  %v233 = vpack.c.b16 %v177, %v176
  %v234 = vpack.c.b16 %v179, %v178
  %v235 = vpack.c.b16 %v181, %v180
  %v236 = vpack.c.b16 %v183, %v182
  %v237 = vpack.c.b16 %v185, %v184
  %v238 = vpack.c.b16 %v187, %v186
  %v239 = vpack.c.b16 %v189, %v188
  %v240 = vpack.c.b16 %v191, %v190
  %v241 = vpack.c.b16 %v193, %v192
  %v242 = vpack.c.b16 %v195, %v194
  %v243 = vpack.c.b16 %v197, %v196
  %v244 = vpack.c.b16 %v199, %v198
  %v245 = vpack.c.b16 %v201, %v200
  %v246 = vpack.c.b16 %v203, %v202
  %v247 = vpack.c.b16 %v205, %v204
  %v248 = vpack.c.b16 %v207, %v206
  %v249 = vpack.c.b16 %v209, %v208
  %v250 = vpack.c.b16 %v211, %v210
  %v251 = vpack.c.b16 %v213, %v212
  %v252 = vpack.c.b16 %v215, %v214
  %v253 = vpack.c.b16 %v217, %v216
  %v254 = vpack.c.b16 %v219, %v218
  %v255 = vpack.c.b16 %v221, %v220
  %v256 = vpack.c.b16 %v223, %v222
  %v257 = vpack.c.b16 %v225, %v224
  %v306 = vunpack.c.l.b16 %v82
  %v307 = vunpack.c.l.b16 %v83
  %v308 = vunpack.c.l.b16 %v84
  %v309 = vunpack.c.l.b16 %v85
  %v310 = vunpack.c.l.b16 %v86
  %v311 = vunpack.c.l.b16 %v87
  %v312 = vunpack.c.l.b16 %v88
  %v313 = vunpack.c.l.b16 %v89
  %v314 = vunpack.c.l.b16 %v90
  %v315 = vunpack.c.l.b16 %v91
  %v316 = vunpack.c.l.b16 %v92
  %v317 = vunpack.c.l.b16 %v93
  %v318 = vunpack.c.l.b16 %v94
  %v319 = vunpack.c.l.b16 %v95
  %v320 = vunpack.c.l.b16 %v96
  %v321 = vunpack.c.l.b16 %v97
  %v322 = vpack.c.b16 %v307, %v306
  %v323 = vpack.c.b16 %v309, %v308
  %v324 = vpack.c.b16 %v311, %v310
  %v325 = vpack.c.b16 %v313, %v312
  %v326 = vpack.c.b16 %v315, %v314
  %v327 = vpack.c.b16 %v317, %v316
  %v328 = vpack.c.b16 %v319, %v318
  %v329 = vpack.c.b16 %v321, %v320
  %338 = vmatprep.subr.bf16.mxu0 0
  %339 = vmatpush1.bf16.msra.mxu0 %v322
  %340 = vmatprep.subr.bf16.mxu0 0
  %341 = vmatpush1.bf16.msra.mxu0 %v323
  %342 = vmatprep.subr.bf16.mxu0 0
  %343 = vmatpush1.bf16.msra.mxu0 %v324
  %344 = vmatprep.subr.bf16.mxu0 0
  %345 = vmatpush1.bf16.msra.mxu0 %v325
  %346 = vmatprep.subr.bf16.mxu0 0
  %347 = vmatpush1.bf16.msra.mxu0 %v326
  %348 = vmatprep.subr.bf16.mxu0 0
  %349 = vmatpush1.bf16.msra.mxu0 %v327
  %350 = vmatprep.subr.bf16.mxu0 0
  %351 = vmatpush1.bf16.msra.mxu0 %v328
  %352 = vmatprep.subr.bf16.mxu0 0
  %353 = vmatpush1.bf16.msra.mxu0 %v329
  %354 = vmatprep.subr.bf16.mxu0 0
  %355 = vmatpush1.bf16.msra.mxu0 0
  %356 = vmatprep.subr.bf16.mxu0 0
  %357 = vmatpush1.bf16.msra.mxu0 0
  %358 = vmatprep.subr.bf16.mxu0 0
  %359 = vmatpush1.bf16.msra.mxu0 0
  %360 = vmatprep.subr.bf16.mxu0 0
  %361 = vmatpush1.bf16.msra.mxu0 0
  %362 = vmatprep.subr.bf16.mxu0 0
  %363 = vmatpush1.bf16.msra.mxu0 0
  %364 = vmatprep.subr.bf16.mxu0 0
  %365 = vmatpush1.bf16.msra.mxu0 0
  %366 = vmatprep.subr.bf16.mxu0 0
  %367 = vmatpush1.bf16.msra.mxu0 0
  %368 = vmatprep.subr.bf16.mxu0 0
  %369 = vmatpush1.bf16.msra.mxu0 0
  %370 = vmatprep.mubr.bf16.mxu0 0
  %371 = vmatmul.mubr.bf16.gmra.mrb[0].mxu0 %v226
  %v372 = vpop.f32.mrb[0].mxu0
  %v373 = vadd.f32 0.0, %v372
  %v374 = vpop.f32.mrb[0].mxu0
  %v375 = vpop.f32.mrb[0].mxu0
  %v376 = vadd.f32 0.0, %v375
  %v377 = vpop.f32.mrb[0].mxu0
  %378 = vmatprep.mubr.bf16.mxu0 0
  %379 = vmatmul.mubr.bf16.gmra.mrb[0].mxu0 %v227
  %v380 = vpop.f32.mrb[0].mxu0
  %v381 = vadd.f32 0.0, %v380
  %v382 = vpop.f32.mrb[0].mxu0
  %v383 = vpop.f32.mrb[0].mxu0
  %v384 = vadd.f32 0.0, %v383
  %v385 = vpop.f32.mrb[0].mxu0
  %386 = vmatprep.mubr.bf16.mxu0 0
  %387 = vmatmul.mubr.bf16.gmra.mrb[0].mxu0 %v228
  %v388 = vpop.f32.mrb[0].mxu0
  %v389 = vadd.f32 0.0, %v388
  %v390 = vpop.f32.mrb[0].mxu0
  %v391 = vpop.f32.mrb[0].mxu0
  %v392 = vadd.f32 0.0, %v391
  %v393 = vpop.f32.mrb[0].mxu0
  %394 = vmatprep.mubr.bf16.mxu0 0
  %395 = vmatmul.mubr.bf16.gmra.mrb[0].mxu0 %v229
  %v396 = vpop.f32.mrb[0].mxu0
  %v397 = vadd.f32 0.0, %v396
  %v398 = vpop.f32.mrb[0].mxu0
  %v399 = vpop.f32.mrb[0].mxu0
  %v400 = vadd.f32 0.0, %v399
  %v401 = vpop.f32.mrb[0].mxu0
  %402 = vmatprep.mubr.bf16.mxu0 0
  %403 = vmatmul.mubr.bf16.gmra.mrb[0].mxu0 %v230
  %v404 = vpop.f32.mrb[0].mxu0
  %v405 = vadd.f32 0.0, %v404
  %v406 = vpop.f32.mrb[0].mxu0
  %v407 = vpop.f32.mrb[0].mxu0
  %v408 = vadd.f32 0.0, %v407
  %v409 = vpop.f32.mrb[0].mxu0
  %410 = vmatprep.mubr.bf16.mxu0 0
  %411 = vmatmul.mubr.bf16.gmra.mrb[0].mxu0 %v231
  %v412 = vpop.f32.mrb[0].mxu0
  %v413 = vadd.f32 0.0, %v412
  %v414 = vpop.f32.mrb[0].mxu0
  %v415 = vpop.f32.mrb[0].mxu0
  %v416 = vadd.f32 0.0, %v415
  %v417 = vpop.f32.mrb[0].mxu0
  %418 = vmatprep.mubr.bf16.mxu0 0
  %419 = vmatmul.mubr.bf16.gmra.mrb[0].mxu0 %v232
  %v420 = vpop.f32.mrb[0].mxu0
  %v421 = vadd.f32 0.0, %v420
  %v422 = vpop.f32.mrb[0].mxu0
  %v423 = vpop.f32.mrb[0].mxu0
  %v424 = vadd.f32 0.0, %v423
  %v425 = vpop.f32.mrb[0].mxu0
  %426 = vmatprep.mubr.bf16.mxu0 0
  %427 = vmatmul.mubr.bf16.gmra.mrb[0].mxu0 %v233
  %v428 = vpop.f32.mrb[0].mxu0
  %v429 = vadd.f32 0.0, %v428
  %v430 = vpop.f32.mrb[0].mxu0
  %v431 = vpop.f32.mrb[0].mxu0
  %v432 = vadd.f32 0.0, %v431
  %v433 = vpop.f32.mrb[0].mxu0
  %434 = vmatprep.mubr.bf16.mxu0 0
  %435 = vmatmul.mubr.bf16.gmra.mrb[0].mxu0 %v234
  %v436 = vpop.f32.mrb[0].mxu0
  %v437 = vadd.f32 0.0, %v436
  %v438 = vpop.f32.mrb[0].mxu0
  %v439 = vpop.f32.mrb[0].mxu0
  %v440 = vadd.f32 0.0, %v439
  %v441 = vpop.f32.mrb[0].mxu0
  %442 = vmatprep.mubr.bf16.mxu0 0
  %443 = vmatmul.mubr.bf16.gmra.mrb[0].mxu0 %v235
  %v444 = vpop.f32.mrb[0].mxu0
  %v445 = vadd.f32 0.0, %v444
  %v446 = vpop.f32.mrb[0].mxu0
  %v447 = vpop.f32.mrb[0].mxu0
  %v448 = vadd.f32 0.0, %v447
  %v449 = vpop.f32.mrb[0].mxu0
  %450 = vmatprep.mubr.bf16.mxu0 0
  %451 = vmatmul.mubr.bf16.gmra.mrb[0].mxu0 %v236
  %v452 = vpop.f32.mrb[0].mxu0
  %v453 = vadd.f32 0.0, %v452
  %v454 = vpop.f32.mrb[0].mxu0
  %v455 = vpop.f32.mrb[0].mxu0
  %v456 = vadd.f32 0.0, %v455
  %v457 = vpop.f32.mrb[0].mxu0
  %458 = vmatprep.mubr.bf16.mxu0 0
  %459 = vmatmul.mubr.bf16.gmra.mrb[0].mxu0 %v237
  %v460 = vpop.f32.mrb[0].mxu0
  %v461 = vadd.f32 0.0, %v460
  %v462 = vpop.f32.mrb[0].mxu0
  %v463 = vpop.f32.mrb[0].mxu0
  %v464 = vadd.f32 0.0, %v463
  %v465 = vpop.f32.mrb[0].mxu0
  %466 = vmatprep.mubr.bf16.mxu0 0
  %467 = vmatmul.mubr.bf16.gmra.mrb[0].mxu0 %v238
  %v468 = vpop.f32.mrb[0].mxu0
  %v469 = vadd.f32 0.0, %v468
  %v470 = vpop.f32.mrb[0].mxu0
  %v471 = vpop.f32.mrb[0].mxu0
  %v472 = vadd.f32 0.0, %v471
  %v473 = vpop.f32.mrb[0].mxu0
  %474 = vmatprep.mubr.bf16.mxu0 0
  %475 = vmatmul.mubr.bf16.gmra.mrb[0].mxu0 %v239
  %v476 = vpop.f32.mrb[0].mxu0
  %v477 = vadd.f32 0.0, %v476
  %v478 = vpop.f32.mrb[0].mxu0
  %v479 = vpop.f32.mrb[0].mxu0
  %v480 = vadd.f32 0.0, %v479
  %v481 = vpop.f32.mrb[0].mxu0
  %482 = vmatprep.mubr.bf16.mxu0 0
  %483 = vmatmul.mubr.bf16.gmra.mrb[0].mxu0 %v240
  %v484 = vpop.f32.mrb[0].mxu0
  %v485 = vadd.f32 0.0, %v484
  %v486 = vpop.f32.mrb[0].mxu0
  %v487 = vpop.f32.mrb[0].mxu0
  %v488 = vadd.f32 0.0, %v487
  %v489 = vpop.f32.mrb[0].mxu0
  %490 = vmatprep.mubr.bf16.mxu0 0
  %491 = vmatmul.mubr.bf16.gmra.mrb[0].mxu0 %v241
  %v492 = vpop.f32.mrb[0].mxu0
  %v493 = vadd.f32 0.0, %v492
  %v494 = vpop.f32.mrb[0].mxu0
  %v495 = vpop.f32.mrb[0].mxu0
  %v496 = vadd.f32 0.0, %v495
  %v497 = vpop.f32.mrb[0].mxu0
  %498 = vmatprep.mubr.bf16.mxu0 0
  %499 = vmatmul.mubr.bf16.gmra.mrb[0].mxu0 %v242
  %v500 = vpop.f32.mrb[0].mxu0
  %v501 = vadd.f32 0.0, %v500
  %v502 = vpop.f32.mrb[0].mxu0
  %v503 = vpop.f32.mrb[0].mxu0
  %v504 = vadd.f32 0.0, %v503
  %v505 = vpop.f32.mrb[0].mxu0
  %506 = vmatprep.mubr.bf16.mxu0 0
  %507 = vmatmul.mubr.bf16.gmra.mrb[0].mxu0 %v243
  %v508 = vpop.f32.mrb[0].mxu0
  %v509 = vadd.f32 0.0, %v508
  %v510 = vpop.f32.mrb[0].mxu0
  %v511 = vpop.f32.mrb[0].mxu0
  %v512 = vadd.f32 0.0, %v511
  %v513 = vpop.f32.mrb[0].mxu0
  %514 = vmatprep.mubr.bf16.mxu0 0
  %515 = vmatmul.mubr.bf16.gmra.mrb[0].mxu0 %v244
  %v516 = vpop.f32.mrb[0].mxu0
  %v517 = vadd.f32 0.0, %v516
  %v518 = vpop.f32.mrb[0].mxu0
  %v519 = vpop.f32.mrb[0].mxu0
  %v520 = vadd.f32 0.0, %v519
  %v521 = vpop.f32.mrb[0].mxu0
  %522 = vmatprep.mubr.bf16.mxu0 0
  %523 = vmatmul.mubr.bf16.gmra.mrb[0].mxu0 %v245
  %v524 = vpop.f32.mrb[0].mxu0
  %v525 = vadd.f32 0.0, %v524
  %v526 = vpop.f32.mrb[0].mxu0
  %v527 = vpop.f32.mrb[0].mxu0
  %v528 = vadd.f32 0.0, %v527
  %v529 = vpop.f32.mrb[0].mxu0
  %530 = vmatprep.mubr.bf16.mxu0 0
  %531 = vmatmul.mubr.bf16.gmra.mrb[0].mxu0 %v246
  %v532 = vpop.f32.mrb[0].mxu0
  %v533 = vadd.f32 0.0, %v532
  %v534 = vpop.f32.mrb[0].mxu0
  %v535 = vpop.f32.mrb[0].mxu0
  %v536 = vadd.f32 0.0, %v535
  %v537 = vpop.f32.mrb[0].mxu0
  %538 = vmatprep.mubr.bf16.mxu0 0
  %539 = vmatmul.mubr.bf16.gmra.mrb[0].mxu0 %v247
  %v540 = vpop.f32.mrb[0].mxu0
  %v541 = vadd.f32 0.0, %v540
  %v542 = vpop.f32.mrb[0].mxu0
  %v543 = vpop.f32.mrb[0].mxu0
  %v544 = vadd.f32 0.0, %v543
  %v545 = vpop.f32.mrb[0].mxu0
  %546 = vmatprep.mubr.bf16.mxu0 0
  %547 = vmatmul.mubr.bf16.gmra.mrb[0].mxu0 %v248
  %v548 = vpop.f32.mrb[0].mxu0
  %v549 = vadd.f32 0.0, %v548
  %v550 = vpop.f32.mrb[0].mxu0
  %v551 = vpop.f32.mrb[0].mxu0
  %v552 = vadd.f32 0.0, %v551
  %v553 = vpop.f32.mrb[0].mxu0
  %554 = vmatprep.mubr.bf16.mxu0 0
  %555 = vmatmul.mubr.bf16.gmra.mrb[0].mxu0 %v249
  %v556 = vpop.f32.mrb[0].mxu0
  %v557 = vadd.f32 0.0, %v556
  %v558 = vpop.f32.mrb[0].mxu0
  %v559 = vpop.f32.mrb[0].mxu0
  %v560 = vadd.f32 0.0, %v559
  %v561 = vpop.f32.mrb[0].mxu0
  %562 = vmatprep.mubr.bf16.mxu0 0
  %563 = vmatmul.mubr.bf16.gmra.mrb[0].mxu0 %v250
  %v564 = vpop.f32.mrb[0].mxu0
  %v565 = vadd.f32 0.0, %v564
  %v566 = vpop.f32.mrb[0].mxu0
  %v567 = vpop.f32.mrb[0].mxu0
  %v568 = vadd.f32 0.0, %v567
  %v569 = vpop.f32.mrb[0].mxu0
  %570 = vmatprep.mubr.bf16.mxu0 0
  %571 = vmatmul.mubr.bf16.gmra.mrb[0].mxu0 %v251
  %v572 = vpop.f32.mrb[0].mxu0
  %v573 = vadd.f32 0.0, %v572
  %v574 = vpop.f32.mrb[0].mxu0
  %v575 = vpop.f32.mrb[0].mxu0
  %v576 = vadd.f32 0.0, %v575
  %v577 = vpop.f32.mrb[0].mxu0
  %578 = vmatprep.mubr.bf16.mxu0 0
  %579 = vmatmul.mubr.bf16.gmra.mrb[0].mxu0 %v252
  %v580 = vpop.f32.mrb[0].mxu0
  %v581 = vadd.f32 0.0, %v580
  %v582 = vpop.f32.mrb[0].mxu0
  %v583 = vpop.f32.mrb[0].mxu0
  %v584 = vadd.f32 0.0, %v583
  %v585 = vpop.f32.mrb[0].mxu0
  %586 = vmatprep.mubr.bf16.mxu0 0
  %587 = vmatmul.mubr.bf16.gmra.mrb[0].mxu0 %v253
  %v588 = vpop.f32.mrb[0].mxu0
  %v589 = vadd.f32 0.0, %v588
  %v590 = vpop.f32.mrb[0].mxu0
  %v591 = vpop.f32.mrb[0].mxu0
  %v592 = vadd.f32 0.0, %v591
  %v593 = vpop.f32.mrb[0].mxu0
  %594 = vmatprep.mubr.bf16.mxu0 0
  %595 = vmatmul.mubr.bf16.gmra.mrb[0].mxu0 %v254
  %v596 = vpop.f32.mrb[0].mxu0
  %v597 = vadd.f32 0.0, %v596
  %v598 = vpop.f32.mrb[0].mxu0
  %v599 = vpop.f32.mrb[0].mxu0
  %v600 = vadd.f32 0.0, %v599
  %v601 = vpop.f32.mrb[0].mxu0
  %602 = vmatprep.mubr.bf16.mxu0 0
  %603 = vmatmul.mubr.bf16.gmra.mrb[0].mxu0 %v255
  %v604 = vpop.f32.mrb[0].mxu0
  %v605 = vadd.f32 0.0, %v604
  %v606 = vpop.f32.mrb[0].mxu0
  %v607 = vpop.f32.mrb[0].mxu0
  %v608 = vadd.f32 0.0, %v607
  %v609 = vpop.f32.mrb[0].mxu0
  %610 = vmatprep.mubr.bf16.mxu0 0
  %611 = vmatmul.mubr.bf16.gmra.mrb[0].mxu0 %v256
  %v612 = vpop.f32.mrb[0].mxu0
  %v613 = vadd.f32 0.0, %v612
  %v614 = vpop.f32.mrb[0].mxu0
  %v615 = vpop.f32.mrb[0].mxu0
  %v616 = vadd.f32 0.0, %v615
  %v617 = vpop.f32.mrb[0].mxu0
  %618 = vmatprep.mubr.bf16.mxu0 0
  %619 = vmatmul.mubr.bf16.gmra.mrb[0].mxu0 %v257
  %v620 = vpop.f32.mrb[0].mxu0
  %v621 = vadd.f32 0.0, %v620
  %v622 = vpop.f32.mrb[0].mxu0
  %v623 = vpop.f32.mrb[0].mxu0
  %v624 = vadd.f32 0.0, %v623
  %v625 = vpop.f32.mrb[0].mxu0
  %626 = vdwg.mxu0
  %v627 = vadd.f32 %v373, %v376
  %v628 = vadd.f32 %v627, %v381
  %v629 = vadd.f32 %v628, %v384
  %v630 = vadd.f32 %v629, %v389
  %v631 = vadd.f32 %v630, %v392
  %v632 = vadd.f32 %v631, %v397
  %v633 = vadd.f32 %v632, %v400
  %v634 = vadd.f32 %v633, %v405
  %v635 = vadd.f32 %v634, %v408
  %v636 = vadd.f32 %v635, %v413
  %v637 = vadd.f32 %v636, %v416
  %v638 = vadd.f32 %v637, %v421
  %v639 = vadd.f32 %v638, %v424
  %v640 = vadd.f32 %v639, %v429
  %v641 = vadd.f32 %v640, %v432
  %v642 = vadd.f32 %v641, %v437
  %v643 = vadd.f32 %v642, %v440
  %v644 = vadd.f32 %v643, %v445
  %v645 = vadd.f32 %v644, %v448
  %v646 = vadd.f32 %v645, %v453
  %v647 = vadd.f32 %v646, %v456
  %v648 = vadd.f32 %v647, %v461
  %v649 = vadd.f32 %v648, %v464
  %v650 = vadd.f32 %v649, %v469
  %v651 = vadd.f32 %v650, %v472
  %v652 = vadd.f32 %v651, %v477
  %v653 = vadd.f32 %v652, %v480
  %v654 = vadd.f32 %v653, %v485
  %v655 = vadd.f32 %v654, %v488
  %v656 = vadd.f32 %v655, %v493
  %v657 = vadd.f32 %v656, %v496
  %v658 = vadd.f32 %v657, %v501
  %v659 = vadd.f32 %v658, %v504
  %v660 = vadd.f32 %v659, %v509
  %v661 = vadd.f32 %v660, %v512
  %v662 = vadd.f32 %v661, %v517
  %v663 = vadd.f32 %v662, %v520
  %v664 = vadd.f32 %v663, %v525
  %v665 = vadd.f32 %v664, %v528
  %v666 = vadd.f32 %v665, %v533
  %v667 = vadd.f32 %v666, %v536
  %v668 = vadd.f32 %v667, %v541
  %v669 = vadd.f32 %v668, %v544
  %v670 = vadd.f32 %v669, %v549
  %v671 = vadd.f32 %v670, %v552
  %v672 = vadd.f32 %v671, %v557
  %v673 = vadd.f32 %v672, %v560
  %v674 = vadd.f32 %v673, %v565
  %v675 = vadd.f32 %v674, %v568
  %v676 = vadd.f32 %v675, %v573
  %v677 = vadd.f32 %v676, %v576
  %v678 = vadd.f32 %v677, %v581
  %v679 = vadd.f32 %v678, %v584
  %v680 = vadd.f32 %v679, %v589
  %v681 = vadd.f32 %v680, %v592
  %v682 = vadd.f32 %v681, %v597
  %v683 = vadd.f32 %v682, %v600
  %v684 = vadd.f32 %v683, %v605
  %v685 = vadd.f32 %v684, %v608
  %v686 = vadd.f32 %v685, %v613
  %v687 = vadd.f32 %v686, %v616
  %v688 = vadd.f32 %v687, %v621
  %v689 = vadd.f32 %v688, %v624
  %v690 = vrot.slane %v689, 4
  %v691 = vadd.f32 %v689, %v690
  %v692 = vrot.slane %v691, 2
  %v693 = vadd.f32 %v691, %v692
  %v694 = vrot.slane %v693, 1
  %v695 = vadd.f32 %v693, %v694
  %v696 = vmul.f32 %v373, %v373
  %v697 = vmul.f32 %v376, %v376
  %v698 = vmul.f32 %v381, %v381
  %v699 = vmul.f32 %v384, %v384
  %v700 = vmul.f32 %v389, %v389
  %v701 = vmul.f32 %v392, %v392
  %v702 = vmul.f32 %v397, %v397
  %v703 = vmul.f32 %v400, %v400
  %v704 = vmul.f32 %v405, %v405
  %v705 = vmul.f32 %v408, %v408
  %v706 = vmul.f32 %v413, %v413
  %v707 = vmul.f32 %v416, %v416
  %v708 = vmul.f32 %v421, %v421
  %v709 = vmul.f32 %v424, %v424
  %v710 = vmul.f32 %v429, %v429
  %v711 = vmul.f32 %v432, %v432
  %v712 = vmul.f32 %v437, %v437
  %v713 = vmul.f32 %v440, %v440
  %v714 = vmul.f32 %v445, %v445
  %v715 = vmul.f32 %v448, %v448
  %v716 = vmul.f32 %v453, %v453
  %v717 = vmul.f32 %v456, %v456
  %v718 = vmul.f32 %v461, %v461
  %v719 = vmul.f32 %v464, %v464
  %v720 = vmul.f32 %v469, %v469
  %v721 = vmul.f32 %v472, %v472
  %v722 = vmul.f32 %v477, %v477
  %v723 = vmul.f32 %v480, %v480
  %v724 = vmul.f32 %v485, %v485
  %v725 = vmul.f32 %v488, %v488
  %v726 = vmul.f32 %v493, %v493
  %v727 = vmul.f32 %v496, %v496
  %v728 = vmul.f32 %v501, %v501
  %v729 = vmul.f32 %v504, %v504
  %v730 = vmul.f32 %v509, %v509
  %v731 = vmul.f32 %v512, %v512
  %v732 = vmul.f32 %v517, %v517
  %v733 = vmul.f32 %v520, %v520
  %v734 = vmul.f32 %v525, %v525
  %v735 = vmul.f32 %v528, %v528
  %v736 = vmul.f32 %v533, %v533
  %v737 = vmul.f32 %v536, %v536
  %v738 = vmul.f32 %v541, %v541
  %v739 = vmul.f32 %v544, %v544
  %v740 = vmul.f32 %v549, %v549
  %v741 = vmul.f32 %v552, %v552
  %v742 = vmul.f32 %v557, %v557
  %v743 = vmul.f32 %v560, %v560
  %v744 = vmul.f32 %v565, %v565
  %v745 = vmul.f32 %v568, %v568
  %v746 = vmul.f32 %v573, %v573
  %v747 = vmul.f32 %v576, %v576
  %v748 = vmul.f32 %v581, %v581
  %v749 = vmul.f32 %v584, %v584
  %v750 = vmul.f32 %v589, %v589
  %v751 = vmul.f32 %v592, %v592
  %v752 = vmul.f32 %v597, %v597
  %v753 = vmul.f32 %v600, %v600
  %v754 = vmul.f32 %v605, %v605
  %v755 = vmul.f32 %v608, %v608
  %v756 = vmul.f32 %v613, %v613
  %v757 = vmul.f32 %v616, %v616
  %v758 = vmul.f32 %v621, %v621
  %v759 = vmul.f32 %v624, %v624
  %v760 = vadd.f32 %v696, %v697
  %v761 = vadd.f32 %v760, %v698
  %v762 = vadd.f32 %v761, %v699
  %v763 = vadd.f32 %v762, %v700
  %v764 = vadd.f32 %v763, %v701
  %v765 = vadd.f32 %v764, %v702
  %v766 = vadd.f32 %v765, %v703
  %v767 = vadd.f32 %v766, %v704
  %v768 = vadd.f32 %v767, %v705
  %v769 = vadd.f32 %v768, %v706
  %v770 = vadd.f32 %v769, %v707
  %v771 = vadd.f32 %v770, %v708
  %v772 = vadd.f32 %v771, %v709
  %v773 = vadd.f32 %v772, %v710
  %v774 = vadd.f32 %v773, %v711
  %v775 = vadd.f32 %v774, %v712
  %v776 = vadd.f32 %v775, %v713
  %v777 = vadd.f32 %v776, %v714
  %v778 = vadd.f32 %v777, %v715
  %v779 = vadd.f32 %v778, %v716
  %v780 = vadd.f32 %v779, %v717
  %v781 = vadd.f32 %v780, %v718
  %v782 = vadd.f32 %v781, %v719
  %v783 = vadd.f32 %v782, %v720
  %v784 = vadd.f32 %v783, %v721
  %v785 = vadd.f32 %v784, %v722
  %v786 = vadd.f32 %v785, %v723
  %v787 = vadd.f32 %v786, %v724
  %v788 = vadd.f32 %v787, %v725
  %v789 = vadd.f32 %v788, %v726
  %v790 = vadd.f32 %v789, %v727
  %v791 = vadd.f32 %v790, %v728
  %v792 = vadd.f32 %v791, %v729
  %v793 = vadd.f32 %v792, %v730
  %v794 = vadd.f32 %v793, %v731
  %v795 = vadd.f32 %v794, %v732
  %v796 = vadd.f32 %v795, %v733
  %v797 = vadd.f32 %v796, %v734
  %v798 = vadd.f32 %v797, %v735
  %v799 = vadd.f32 %v798, %v736
  %v800 = vadd.f32 %v799, %v737
  %v801 = vadd.f32 %v800, %v738
  %v802 = vadd.f32 %v801, %v739
  %v803 = vadd.f32 %v802, %v740
  %v804 = vadd.f32 %v803, %v741
  %v805 = vadd.f32 %v804, %v742
  %v806 = vadd.f32 %v805, %v743
  %v807 = vadd.f32 %v806, %v744
  %v808 = vadd.f32 %v807, %v745
  %v809 = vadd.f32 %v808, %v746
  %v810 = vadd.f32 %v809, %v747
  %v811 = vadd.f32 %v810, %v748
  %v812 = vadd.f32 %v811, %v749
  %v813 = vadd.f32 %v812, %v750
  %v814 = vadd.f32 %v813, %v751
  %v815 = vadd.f32 %v814, %v752
  %v816 = vadd.f32 %v815, %v753
  %v817 = vadd.f32 %v816, %v754
  %v818 = vadd.f32 %v817, %v755
  %v819 = vadd.f32 %v818, %v756
  %v820 = vadd.f32 %v819, %v757
  %v821 = vadd.f32 %v820, %v758
  %v822 = vadd.f32 %v821, %v759
  %v823 = vrot.slane %v822, 4
  %v824 = vadd.f32 %v822, %v823
  %v825 = vrot.slane %v824, 2
  %v826 = vadd.f32 %v824, %v825
  %v827 = vrot.slane %v826, 1
  %v828 = vadd.f32 %v826, %v827
  %v829 = vld [vmem:[%s2] sm:$0x1]
  %v830 = vld [vmem:[%s3] sm:$0x1]
  %v831 = vmul.f32 %v695, 0.001953125
  %v832 = vmul.f32 %v828, 0.001953125
  %v833 = vmul.f32 %v831, %v831
  %v834 = vsub.f32 %v832, %v833
  %v835 = vmax.f32 %v834, 0.0
  %v836 = vadd.f32 %v835, 1e-05
  %v837 = vrsqrt.pop %v836
  %v838 = vmul.f32 %v829, %v837
  %v839 = vmul.f32 %v831, %v838
  %v840 = vsub.f32 %v830, %v839
  %v842 = vlaneseq
  %v843 = vshrl.u32 %v842, 7
  %v844 = vsub.s32 0, %v843
  %v845 = vrot.slane %v838, %v844
  %v847 = vmul.f32 %v373, %v845
  %v848 = vmul.f32 %v376, %v845
  %v849 = vmul.f32 %v381, %v845
  %v850 = vmul.f32 %v384, %v845
  %v851 = vmul.f32 %v389, %v845
  %v852 = vmul.f32 %v392, %v845
  %v853 = vmul.f32 %v397, %v845
  %v854 = vmul.f32 %v400, %v845
  %v855 = vmul.f32 %v405, %v845
  %v856 = vmul.f32 %v408, %v845
  %v857 = vmul.f32 %v413, %v845
  %v858 = vmul.f32 %v416, %v845
  %v859 = vmul.f32 %v421, %v845
  %v860 = vmul.f32 %v424, %v845
  %v861 = vmul.f32 %v429, %v845
  %v862 = vmul.f32 %v432, %v845
  %v863 = vmul.f32 %v437, %v845
  %v864 = vmul.f32 %v440, %v845
  %v865 = vmul.f32 %v445, %v845
  %v866 = vmul.f32 %v448, %v845
  %v867 = vmul.f32 %v453, %v845
  %v868 = vmul.f32 %v456, %v845
  %v869 = vmul.f32 %v461, %v845
  %v870 = vmul.f32 %v464, %v845
  %v871 = vmul.f32 %v469, %v845
  %v872 = vmul.f32 %v472, %v845
  %v873 = vmul.f32 %v477, %v845
  %v874 = vmul.f32 %v480, %v845
  %v875 = vmul.f32 %v485, %v845
  %v876 = vmul.f32 %v488, %v845
  %v877 = vmul.f32 %v493, %v845
  %v878 = vmul.f32 %v496, %v845
  %v879 = vmul.f32 %v501, %v845
  %v880 = vmul.f32 %v504, %v845
  %v881 = vmul.f32 %v509, %v845
  %v882 = vmul.f32 %v512, %v845
  %v883 = vmul.f32 %v517, %v845
  %v884 = vmul.f32 %v520, %v845
  %v885 = vmul.f32 %v525, %v845
  %v886 = vmul.f32 %v528, %v845
  %v887 = vmul.f32 %v533, %v845
  %v888 = vmul.f32 %v536, %v845
  %v889 = vmul.f32 %v541, %v845
  %v890 = vmul.f32 %v544, %v845
  %v891 = vmul.f32 %v549, %v845
  %v892 = vmul.f32 %v552, %v845
  %v893 = vmul.f32 %v557, %v845
  %v894 = vmul.f32 %v560, %v845
  %v895 = vmul.f32 %v565, %v845
  %v896 = vmul.f32 %v568, %v845
  %v897 = vmul.f32 %v573, %v845
  %v898 = vmul.f32 %v576, %v845
  %v899 = vmul.f32 %v581, %v845
  %v900 = vmul.f32 %v584, %v845
  %v901 = vmul.f32 %v589, %v845
  %v902 = vmul.f32 %v592, %v845
  %v903 = vmul.f32 %v597, %v845
  %v904 = vmul.f32 %v600, %v845
  %v905 = vmul.f32 %v605, %v845
  %v906 = vmul.f32 %v608, %v845
  %v907 = vmul.f32 %v613, %v845
  %v908 = vmul.f32 %v616, %v845
  %v909 = vmul.f32 %v621, %v845
  %v910 = vmul.f32 %v624, %v845
  %v912 = vlaneseq
  %v913 = vshrl.u32 %v912, 7
  %v914 = vsub.s32 0, %v913
  %v915 = vrot.slane %v840, %v914
  %v917 = vadd.f32 %v847, %v915
  %v918 = vadd.f32 %v848, %v915
  %v919 = vadd.f32 %v849, %v915
  %v920 = vadd.f32 %v850, %v915
  %v921 = vadd.f32 %v851, %v915
  %v922 = vadd.f32 %v852, %v915
  %v923 = vadd.f32 %v853, %v915
  %v924 = vadd.f32 %v854, %v915
  %v925 = vadd.f32 %v855, %v915
  %v926 = vadd.f32 %v856, %v915
  %v927 = vadd.f32 %v857, %v915
  %v928 = vadd.f32 %v858, %v915
  %v929 = vadd.f32 %v859, %v915
  %v930 = vadd.f32 %v860, %v915
  %v931 = vadd.f32 %v861, %v915
  %v932 = vadd.f32 %v862, %v915
  %v933 = vadd.f32 %v863, %v915
  %v934 = vadd.f32 %v864, %v915
  %v935 = vadd.f32 %v865, %v915
  %v936 = vadd.f32 %v866, %v915
  %v937 = vadd.f32 %v867, %v915
  %v938 = vadd.f32 %v868, %v915
  %v939 = vadd.f32 %v869, %v915
  %v940 = vadd.f32 %v870, %v915
  %v941 = vadd.f32 %v871, %v915
  %v942 = vadd.f32 %v872, %v915
  %v943 = vadd.f32 %v873, %v915
  %v944 = vadd.f32 %v874, %v915
  %v945 = vadd.f32 %v875, %v915
  %v946 = vadd.f32 %v876, %v915
  %v947 = vadd.f32 %v877, %v915
  %v948 = vadd.f32 %v878, %v915
  %v949 = vadd.f32 %v879, %v915
  %v950 = vadd.f32 %v880, %v915
  %v951 = vadd.f32 %v881, %v915
  %v952 = vadd.f32 %v882, %v915
  %v953 = vadd.f32 %v883, %v915
  %v954 = vadd.f32 %v884, %v915
  %v955 = vadd.f32 %v885, %v915
  %v956 = vadd.f32 %v886, %v915
  %v957 = vadd.f32 %v887, %v915
  %v958 = vadd.f32 %v888, %v915
  %v959 = vadd.f32 %v889, %v915
  %v960 = vadd.f32 %v890, %v915
  %v961 = vadd.f32 %v891, %v915
  %v962 = vadd.f32 %v892, %v915
  %v963 = vadd.f32 %v893, %v915
  %v964 = vadd.f32 %v894, %v915
  %v965 = vadd.f32 %v895, %v915
  %v966 = vadd.f32 %v896, %v915
  %v967 = vadd.f32 %v897, %v915
  %v968 = vadd.f32 %v898, %v915
  %v969 = vadd.f32 %v899, %v915
  %v970 = vadd.f32 %v900, %v915
  %v971 = vadd.f32 %v901, %v915
  %v972 = vadd.f32 %v902, %v915
  %v973 = vadd.f32 %v903, %v915
  %v974 = vadd.f32 %v904, %v915
  %v975 = vadd.f32 %v905, %v915
  %v976 = vadd.f32 %v906, %v915
  %v977 = vadd.f32 %v907, %v915
  %v978 = vadd.f32 %v908, %v915
  %v979 = vadd.f32 %v909, %v915
  %v980 = vadd.f32 %v910, %v915
  %v981 = vmax.f32 %v917, 0.0
  %v982 = vmax.f32 %v918, 0.0
  %v983 = vmax.f32 %v919, 0.0
  %v984 = vmax.f32 %v920, 0.0
  %v985 = vmax.f32 %v921, 0.0
  %v986 = vmax.f32 %v922, 0.0
  %v987 = vmax.f32 %v923, 0.0
  %v988 = vmax.f32 %v924, 0.0
  %v989 = vmax.f32 %v925, 0.0
  %v990 = vmax.f32 %v926, 0.0
  %v991 = vmax.f32 %v927, 0.0
  %v992 = vmax.f32 %v928, 0.0
  %v993 = vmax.f32 %v929, 0.0
  %v994 = vmax.f32 %v930, 0.0
  %v995 = vmax.f32 %v931, 0.0
  %v996 = vmax.f32 %v932, 0.0
  %v997 = vmax.f32 %v933, 0.0
  %v998 = vmax.f32 %v934, 0.0
  %v999 = vmax.f32 %v935, 0.0
  %v1000 = vmax.f32 %v936, 0.0
  %v1001 = vmax.f32 %v937, 0.0
  %v1002 = vmax.f32 %v938, 0.0
  %v1003 = vmax.f32 %v939, 0.0
  %v1004 = vmax.f32 %v940, 0.0
  %v1005 = vmax.f32 %v941, 0.0
  %v1006 = vmax.f32 %v942, 0.0
  %v1007 = vmax.f32 %v943, 0.0
  %v1008 = vmax.f32 %v944, 0.0
  %v1009 = vmax.f32 %v945, 0.0
  %v1010 = vmax.f32 %v946, 0.0
  %v1011 = vmax.f32 %v947, 0.0
  %v1012 = vmax.f32 %v948, 0.0
  %v1013 = vmax.f32 %v949, 0.0
  %v1014 = vmax.f32 %v950, 0.0
  %v1015 = vmax.f32 %v951, 0.0
  %v1016 = vmax.f32 %v952, 0.0
  %v1017 = vmax.f32 %v953, 0.0
  %v1018 = vmax.f32 %v954, 0.0
  %v1019 = vmax.f32 %v955, 0.0
  %v1020 = vmax.f32 %v956, 0.0
  %v1021 = vmax.f32 %v957, 0.0
  %v1022 = vmax.f32 %v958, 0.0
  %v1023 = vmax.f32 %v959, 0.0
  %v1024 = vmax.f32 %v960, 0.0
  %v1025 = vmax.f32 %v961, 0.0
  %v1026 = vmax.f32 %v962, 0.0
  %v1027 = vmax.f32 %v963, 0.0
  %v1028 = vmax.f32 %v964, 0.0
  %v1029 = vmax.f32 %v965, 0.0
  %v1030 = vmax.f32 %v966, 0.0
  %v1031 = vmax.f32 %v967, 0.0
  %v1032 = vmax.f32 %v968, 0.0
  %v1033 = vmax.f32 %v969, 0.0
  %v1034 = vmax.f32 %v970, 0.0
  %v1035 = vmax.f32 %v971, 0.0
  %v1036 = vmax.f32 %v972, 0.0
  %v1037 = vmax.f32 %v973, 0.0
  %v1038 = vmax.f32 %v974, 0.0
  %v1039 = vmax.f32 %v975, 0.0
  %v1040 = vmax.f32 %v976, 0.0
  %v1041 = vmax.f32 %v977, 0.0
  %v1042 = vmax.f32 %v978, 0.0
  %v1043 = vmax.f32 %v979, 0.0
  %v1044 = vmax.f32 %v980, 0.0
  %v1045 = vpack.c.bf16 %v982, %v981
  %v1046 = vpack.c.bf16 %v984, %v983
  %v1047 = vpack.c.bf16 %v986, %v985
  %v1048 = vpack.c.bf16 %v988, %v987
  %v1049 = vpack.c.bf16 %v990, %v989
  %v1050 = vpack.c.bf16 %v992, %v991
  %v1051 = vpack.c.bf16 %v994, %v993
  %v1052 = vpack.c.bf16 %v996, %v995
  %v1053 = vpack.c.bf16 %v998, %v997
  %v1054 = vpack.c.bf16 %v1000, %v999
  %v1055 = vpack.c.bf16 %v1002, %v1001
  %v1056 = vpack.c.bf16 %v1004, %v1003
  %v1057 = vpack.c.bf16 %v1006, %v1005
  %v1058 = vpack.c.bf16 %v1008, %v1007
  %v1059 = vpack.c.bf16 %v1010, %v1009
  %v1060 = vpack.c.bf16 %v1012, %v1011
  %v1061 = vpack.c.bf16 %v1014, %v1013
  %v1062 = vpack.c.bf16 %v1016, %v1015
  %v1063 = vpack.c.bf16 %v1018, %v1017
  %v1064 = vpack.c.bf16 %v1020, %v1019
  %v1065 = vpack.c.bf16 %v1022, %v1021
  %v1066 = vpack.c.bf16 %v1024, %v1023
  %v1067 = vpack.c.bf16 %v1026, %v1025
  %v1068 = vpack.c.bf16 %v1028, %v1027
  %v1069 = vpack.c.bf16 %v1030, %v1029
  %v1070 = vpack.c.bf16 %v1032, %v1031
  %v1071 = vpack.c.bf16 %v1034, %v1033
  %v1072 = vpack.c.bf16 %v1036, %v1035
  %v1073 = vpack.c.bf16 %v1038, %v1037
  %v1074 = vpack.c.bf16 %v1040, %v1039
  %v1075 = vpack.c.bf16 %v1042, %v1041
  %v1076 = vpack.c.bf16 %v1044, %v1043
  %v1109 = vunpack.c.l.b16 %v1045
  %v1110 = vunpack.c.h.b16 %v1045
  %v1111 = vunpack.c.l.b16 %v1046
  %v1112 = vunpack.c.h.b16 %v1046
  %v1113 = vunpack.c.l.b16 %v1047
  %v1114 = vunpack.c.h.b16 %v1047
  %v1115 = vunpack.c.l.b16 %v1048
  %v1116 = vunpack.c.h.b16 %v1048
  %v1117 = vunpack.c.l.b16 %v1049
  %v1118 = vunpack.c.h.b16 %v1049
  %v1119 = vunpack.c.l.b16 %v1050
  %v1120 = vunpack.c.h.b16 %v1050
  %v1121 = vunpack.c.l.b16 %v1051
  %v1122 = vunpack.c.h.b16 %v1051
  %v1123 = vunpack.c.l.b16 %v1052
  %v1124 = vunpack.c.h.b16 %v1052
  %v1125 = vunpack.c.l.b16 %v1053
  %v1126 = vunpack.c.h.b16 %v1053
  %v1127 = vunpack.c.l.b16 %v1054
  %v1128 = vunpack.c.h.b16 %v1054
  %v1129 = vunpack.c.l.b16 %v1055
  %v1130 = vunpack.c.h.b16 %v1055
  %v1131 = vunpack.c.l.b16 %v1056
  %v1132 = vunpack.c.h.b16 %v1056
  %v1133 = vunpack.c.l.b16 %v1057
  %v1134 = vunpack.c.h.b16 %v1057
  %v1135 = vunpack.c.l.b16 %v1058
  %v1136 = vunpack.c.h.b16 %v1058
  %v1137 = vunpack.c.l.b16 %v1059
  %v1138 = vunpack.c.h.b16 %v1059
  %v1139 = vunpack.c.l.b16 %v1060
  %v1140 = vunpack.c.h.b16 %v1060
  %v1141 = vunpack.c.l.b16 %v1061
  %v1142 = vunpack.c.h.b16 %v1061
  %v1143 = vunpack.c.l.b16 %v1062
  %v1144 = vunpack.c.h.b16 %v1062
  %v1145 = vunpack.c.l.b16 %v1063
  %v1146 = vunpack.c.h.b16 %v1063
  %v1147 = vunpack.c.l.b16 %v1064
  %v1148 = vunpack.c.h.b16 %v1064
  %v1149 = vunpack.c.l.b16 %v1065
  %v1150 = vunpack.c.h.b16 %v1065
  %v1151 = vunpack.c.l.b16 %v1066
  %v1152 = vunpack.c.h.b16 %v1066
  %v1153 = vunpack.c.l.b16 %v1067
  %v1154 = vunpack.c.h.b16 %v1067
  %v1155 = vunpack.c.l.b16 %v1068
  %v1156 = vunpack.c.h.b16 %v1068
  %v1157 = vunpack.c.l.b16 %v1069
  %v1158 = vunpack.c.h.b16 %v1069
  %v1159 = vunpack.c.l.b16 %v1070
  %v1160 = vunpack.c.h.b16 %v1070
  %v1161 = vunpack.c.l.b16 %v1071
  %v1162 = vunpack.c.h.b16 %v1071
  %v1163 = vunpack.c.l.b16 %v1072
  %v1164 = vunpack.c.h.b16 %v1072
  %v1165 = vunpack.c.l.b16 %v1073
  %v1166 = vunpack.c.h.b16 %v1073
  %v1167 = vunpack.c.l.b16 %v1074
  %v1168 = vunpack.c.h.b16 %v1074
  %v1169 = vunpack.c.l.b16 %v1075
  %v1170 = vunpack.c.h.b16 %v1075
  %v1171 = vunpack.c.l.b16 %v1076
  %v1172 = vunpack.c.h.b16 %v1076
  %v1173 = vpack.c.b16 %v1109, %v1109
  %v1174 = vpack.c.b16 %v1110, %v1110
  %v1175 = vpack.c.b16 %v1111, %v1111
  %v1176 = vpack.c.b16 %v1112, %v1112
  %v1177 = vpack.c.b16 %v1113, %v1113
  %v1178 = vpack.c.b16 %v1114, %v1114
  %v1179 = vpack.c.b16 %v1115, %v1115
  %v1180 = vpack.c.b16 %v1116, %v1116
  %v1181 = vpack.c.b16 %v1117, %v1117
  %v1182 = vpack.c.b16 %v1118, %v1118
  %v1183 = vpack.c.b16 %v1119, %v1119
  %v1184 = vpack.c.b16 %v1120, %v1120
  %v1185 = vpack.c.b16 %v1121, %v1121
  %v1186 = vpack.c.b16 %v1122, %v1122
  %v1187 = vpack.c.b16 %v1123, %v1123
  %v1188 = vpack.c.b16 %v1124, %v1124
  %v1189 = vpack.c.b16 %v1125, %v1125
  %v1190 = vpack.c.b16 %v1126, %v1126
  %v1191 = vpack.c.b16 %v1127, %v1127
  %v1192 = vpack.c.b16 %v1128, %v1128
  %v1193 = vpack.c.b16 %v1129, %v1129
  %v1194 = vpack.c.b16 %v1130, %v1130
  %v1195 = vpack.c.b16 %v1131, %v1131
  %v1196 = vpack.c.b16 %v1132, %v1132
  %v1197 = vpack.c.b16 %v1133, %v1133
  %v1198 = vpack.c.b16 %v1134, %v1134
  %v1199 = vpack.c.b16 %v1135, %v1135
  %v1200 = vpack.c.b16 %v1136, %v1136
  %v1201 = vpack.c.b16 %v1137, %v1137
  %v1202 = vpack.c.b16 %v1138, %v1138
  %v1203 = vpack.c.b16 %v1139, %v1139
  %v1204 = vpack.c.b16 %v1140, %v1140
  %v1205 = vpack.c.b16 %v1141, %v1141
  %v1206 = vpack.c.b16 %v1142, %v1142
  %v1207 = vpack.c.b16 %v1143, %v1143
  %v1208 = vpack.c.b16 %v1144, %v1144
  %v1209 = vpack.c.b16 %v1145, %v1145
  %v1210 = vpack.c.b16 %v1146, %v1146
  %v1211 = vpack.c.b16 %v1147, %v1147
  %v1212 = vpack.c.b16 %v1148, %v1148
  %v1213 = vpack.c.b16 %v1149, %v1149
  %v1214 = vpack.c.b16 %v1150, %v1150
  %v1215 = vpack.c.b16 %v1151, %v1151
  %v1216 = vpack.c.b16 %v1152, %v1152
  %v1217 = vpack.c.b16 %v1153, %v1153
  %v1218 = vpack.c.b16 %v1154, %v1154
  %v1219 = vpack.c.b16 %v1155, %v1155
  %v1220 = vpack.c.b16 %v1156, %v1156
  %v1221 = vpack.c.b16 %v1157, %v1157
  %v1222 = vpack.c.b16 %v1158, %v1158
  %v1223 = vpack.c.b16 %v1159, %v1159
  %v1224 = vpack.c.b16 %v1160, %v1160
  %v1225 = vpack.c.b16 %v1161, %v1161
  %v1226 = vpack.c.b16 %v1162, %v1162
  %v1227 = vpack.c.b16 %v1163, %v1163
  %v1228 = vpack.c.b16 %v1164, %v1164
  %v1229 = vpack.c.b16 %v1165, %v1165
  %v1230 = vpack.c.b16 %v1166, %v1166
  %v1231 = vpack.c.b16 %v1167, %v1167
  %v1232 = vpack.c.b16 %v1168, %v1168
  %v1233 = vpack.c.b16 %v1169, %v1169
  %v1234 = vpack.c.b16 %v1170, %v1170
  %v1235 = vpack.c.b16 %v1171, %v1171
  %v1236 = vpack.c.b16 %v1172, %v1172
  %1301 = vst [vmem:[%s4] sm:$0xf] %v1173
  %1302 = vst [vmem:[%s4 + $0x4] sm:$0xf] %v1174
  %1303 = vst [vmem:[%s4 + $0x8] sm:$0xf] %v1175
  %1304 = vst [vmem:[%s4 + $0xc] sm:$0xf] %v1176
  %1305 = vst [vmem:[%s4 + $0x10] sm:$0xf] %v1177
  %1306 = vst [vmem:[%s4 + $0x14] sm:$0xf] %v1178
  %1307 = vst [vmem:[%s4 + $0x18] sm:$0xf] %v1179
  %1308 = vst [vmem:[%s4 + $0x1c] sm:$0xf] %v1180
  %1309 = vst [vmem:[%s4 + $0x20] sm:$0xf] %v1181
  %1310 = vst [vmem:[%s4 + $0x24] sm:$0xf] %v1182
  %1311 = vst [vmem:[%s4 + $0x28] sm:$0xf] %v1183
  %1312 = vst [vmem:[%s4 + $0x2c] sm:$0xf] %v1184
  %1313 = vst [vmem:[%s4 + $0x30] sm:$0xf] %v1185
  %1314 = vst [vmem:[%s4 + $0x34] sm:$0xf] %v1186
  %1315 = vst [vmem:[%s4 + $0x38] sm:$0xf] %v1187
  %1316 = vst [vmem:[%s4 + $0x3c] sm:$0xf] %v1188
  %1317 = vst [vmem:[%s4 + $0x40] sm:$0xf] %v1189
  %1318 = vst [vmem:[%s4 + $0x44] sm:$0xf] %v1190
  %1319 = vst [vmem:[%s4 + $0x48] sm:$0xf] %v1191
  %1320 = vst [vmem:[%s4 + $0x4c] sm:$0xf] %v1192
  %1321 = vst [vmem:[%s4 + $0x50] sm:$0xf] %v1193
  %1322 = vst [vmem:[%s4 + $0x54] sm:$0xf] %v1194
  %1323 = vst [vmem:[%s4 + $0x58] sm:$0xf] %v1195
  %1324 = vst [vmem:[%s4 + $0x5c] sm:$0xf] %v1196
  %1325 = vst [vmem:[%s4 + $0x60] sm:$0xf] %v1197
  %1326 = vst [vmem:[%s4 + $0x64] sm:$0xf] %v1198
  %1327 = vst [vmem:[%s4 + $0x68] sm:$0xf] %v1199
  %1328 = vst [vmem:[%s4 + $0x6c] sm:$0xf] %v1200
  %1329 = vst [vmem:[%s4 + $0x70] sm:$0xf] %v1201
  %1330 = vst [vmem:[%s4 + $0x74] sm:$0xf] %v1202
  %1331 = vst [vmem:[%s4 + $0x78] sm:$0xf] %v1203
  %1332 = vst [vmem:[%s4 + $0x7c] sm:$0xf] %v1204
  %1333 = vst [vmem:[%s4 + $0x80] sm:$0xf] %v1205
  %1334 = vst [vmem:[%s4 + $0x84] sm:$0xf] %v1206
  %1335 = vst [vmem:[%s4 + $0x88] sm:$0xf] %v1207
  %1336 = vst [vmem:[%s4 + $0x8c] sm:$0xf] %v1208
  %1337 = vst [vmem:[%s4 + $0x90] sm:$0xf] %v1209
  %1338 = vst [vmem:[%s4 + $0x94] sm:$0xf] %v1210
  %1339 = vst [vmem:[%s4 + $0x98] sm:$0xf] %v1211
  %1340 = vst [vmem:[%s4 + $0x9c] sm:$0xf] %v1212
  %1341 = vst [vmem:[%s4 + $0xa0] sm:$0xf] %v1213
  %1342 = vst [vmem:[%s4 + $0xa4] sm:$0xf] %v1214
  %1343 = vst [vmem:[%s4 + $0xa8] sm:$0xf] %v1215
  %1344 = vst [vmem:[%s4 + $0xac] sm:$0xf] %v1216
  %1345 = vst [vmem:[%s4 + $0xb0] sm:$0xf] %v1217
  %1346 = vst [vmem:[%s4 + $0xb4] sm:$0xf] %v1218
  %1347 = vst [vmem:[%s4 + $0xb8] sm:$0xf] %v1219
  %1348 = vst [vmem:[%s4 + $0xbc] sm:$0xf] %v1220
  %1349 = vst [vmem:[%s4 + $0xc0] sm:$0xf] %v1221
  %1350 = vst [vmem:[%s4 + $0xc4] sm:$0xf] %v1222
  %1351 = vst [vmem:[%s4 + $0xc8] sm:$0xf] %v1223
  %1352 = vst [vmem:[%s4 + $0xcc] sm:$0xf] %v1224
  %1353 = vst [vmem:[%s4 + $0xd0] sm:$0xf] %v1225
  %1354 = vst [vmem:[%s4 + $0xd4] sm:$0xf] %v1226
  %1355 = vst [vmem:[%s4 + $0xd8] sm:$0xf] %v1227
  %1356 = vst [vmem:[%s4 + $0xdc] sm:$0xf] %v1228
  %1357 = vst [vmem:[%s4 + $0xe0] sm:$0xf] %v1229
  %1358 = vst [vmem:[%s4 + $0xe4] sm:$0xf] %v1230
  %1359 = vst [vmem:[%s4 + $0xe8] sm:$0xf] %v1231
  %1360 = vst [vmem:[%s4 + $0xec] sm:$0xf] %v1232
  %1361 = vst [vmem:[%s4 + $0xf0] sm:$0xf] %v1233
  %1362 = vst [vmem:[%s4 + $0xf4] sm:$0xf] %v1234
  %1363 = vst [vmem:[%s4 + $0xf8] sm:$0xf] %v1235
  %1364 = vst [vmem:[%s4 + $0xfc] sm:$0xf] %v1236
  // Predicated region
  $region18: #{bottleneck_identify_psp.3} parent=0 // pred_check
    _
  $region19: #{bottleneck_identify_psp.3} parent=0 // pred_check_branch
    %1366 = sbr.rel (0) target = $region21
  $region20: #{bottleneck_identify_psp.3} parent=0 // pred_region
    _
  $region21: #{bottleneck_identify_psp.3} parent=0 // pred_fallthru
    _
  // Predicated region
  $region22: #{bottleneck_identify_psp.3} parent=0 // pred_check
    _
  $region23: #{bottleneck_identify_psp.3} parent=0 // pred_check_branch
    %1368 = sbr.rel (0) target = $region25
  $region24: #{bottleneck_identify_psp.3} parent=0 // pred_region
    _
  $region25: #{bottleneck_identify_psp.3} parent=0 // pred_fallthru
    _

// kernel: bottleneck_identify_psp.5
$region0: #{bottleneck_identify_psp.5}
  #allocation0 [shape = 'u32[]', space=smem, size = 0x4, offset = 0x4, fixed_abs, tag = 'smem constant byte address 0x4 - core index']
  #allocation1 [shape = 'u32[144,128]{1,0:T(1,128)}', space=vmem, size = 0x12000, scoped, tag = 'internal scratch']
  %s0 = inlined_call_operand.vmem [shape: bf16[512,128], index: 0, kind: input, shape index: {}]
  %s1 = inlined_call_operand.vmem [shape: bf16[128,128], index: 1, kind: input, shape index: {}]
  %s2 = inlined_call_operand.vmem [shape: f32[1,128], index: 2, kind: input, shape index: {}]
  %s3 = inlined_call_operand.vmem [shape: f32[1,128], index: 3, kind: input, shape index: {}]
  %s4 = inlined_call_operand.vmem [shape: f32[512,128], index: 4, kind: input, shape index: {}]
  %s5 = inlined_call_operand.vmem [shape: f32[512,128], index: 5, kind: output, shape index: {}]
  %s6 = sld [smem:[#allocation0]]
  $region30: #{bottleneck_identify_psp.5} parent=0
    _
  %s8 = ssub.s32 1, %s6
  %s9 = scalar_select 0, %s8, %s6
  // Predicated region
  $region2: #{bottleneck_identify_psp.5} parent=0 // pred_check
    _
  $region3: #{bottleneck_identify_psp.5} parent=0 // pred_check_branch
    %11 = sbr.rel (0) target = $region5
  $region4: #{bottleneck_identify_psp.5} parent=0 // pred_region
    _
  $region5: #{bottleneck_identify_psp.5} parent=0 // pred_fallthru
    _
  // Predicated region
  $region6: #{bottleneck_identify_psp.5} parent=0 // pred_check
    _
  $region7: #{bottleneck_identify_psp.5} parent=0 // pred_check_branch
    %13 = sbr.rel (0) target = $region9
  $region8: #{bottleneck_identify_psp.5} parent=0 // pred_region
    _
  $region9: #{bottleneck_identify_psp.5} parent=0 // pred_fallthru
    _
  // Predicated region
  $region10: #{bottleneck_identify_psp.5} parent=0 // pred_check
    _
  $region11: #{bottleneck_identify_psp.5} parent=0 // pred_check_branch
    %15 = sbr.rel (0) target = $region13
  $region12: #{bottleneck_identify_psp.5} parent=0 // pred_region
    _
  $region13: #{bottleneck_identify_psp.5} parent=0 // pred_fallthru
    _
  // Predicated region
  $region14: #{bottleneck_identify_psp.5} parent=0 // pred_check
    _
  $region15: #{bottleneck_identify_psp.5} parent=0 // pred_check_branch
    %17 = sbr.rel (0) target = $region17
  $region16: #{bottleneck_identify_psp.5} parent=0 // pred_region
    _
  $region17: #{bottleneck_identify_psp.5} parent=0 // pred_fallthru
    _
  // Predicated region
  $region18: #{bottleneck_identify_psp.5} parent=0 // pred_check
    _
  $region19: #{bottleneck_identify_psp.5} parent=0 // pred_check_branch
    %19 = sbr.rel (0) target = $region21
  $region20: #{bottleneck_identify_psp.5} parent=0 // pred_region
    _
  $region21: #{bottleneck_identify_psp.5} parent=0 // pred_fallthru
    _
  %v21 = vld [vmem:[%s0] sm:$0xf]
  %v22 = vld [vmem:[%s0 + $0x4] sm:$0xf]
  %v23 = vld [vmem:[%s0 + $0x8] sm:$0xf]
  %v24 = vld [vmem:[%s0 + $0xc] sm:$0xf]
  %v25 = vld [vmem:[%s0 + $0x10] sm:$0xf]
  %v26 = vld [vmem:[%s0 + $0x14] sm:$0xf]
  %v27 = vld [vmem:[%s0 + $0x18] sm:$0xf]
  %v28 = vld [vmem:[%s0 + $0x1c] sm:$0xf]
  %v29 = vld [vmem:[%s0 + $0x20] sm:$0xf]
  %v30 = vld [vmem:[%s0 + $0x24] sm:$0xf]
  %v31 = vld [vmem:[%s0 + $0x28] sm:$0xf]
  %v32 = vld [vmem:[%s0 + $0x2c] sm:$0xf]
  %v33 = vld [vmem:[%s0 + $0x30] sm:$0xf]
  %v34 = vld [vmem:[%s0 + $0x34] sm:$0xf]
  %v35 = vld [vmem:[%s0 + $0x38] sm:$0xf]
  %v36 = vld [vmem:[%s0 + $0x3c] sm:$0xf]
  %v37 = vld [vmem:[%s0 + $0x40] sm:$0xf]
  %v38 = vld [vmem:[%s0 + $0x44] sm:$0xf]
  %v39 = vld [vmem:[%s0 + $0x48] sm:$0xf]
  %v40 = vld [vmem:[%s0 + $0x4c] sm:$0xf]
  %v41 = vld [vmem:[%s0 + $0x50] sm:$0xf]
  %v42 = vld [vmem:[%s0 + $0x54] sm:$0xf]
  %v43 = vld [vmem:[%s0 + $0x58] sm:$0xf]
  %v44 = vld [vmem:[%s0 + $0x5c] sm:$0xf]
  %v45 = vld [vmem:[%s0 + $0x60] sm:$0xf]
  %v46 = vld [vmem:[%s0 + $0x64] sm:$0xf]
  %v47 = vld [vmem:[%s0 + $0x68] sm:$0xf]
  %v48 = vld [vmem:[%s0 + $0x6c] sm:$0xf]
  %v49 = vld [vmem:[%s0 + $0x70] sm:$0xf]
  %v50 = vld [vmem:[%s0 + $0x74] sm:$0xf]
  %v51 = vld [vmem:[%s0 + $0x78] sm:$0xf]
  %v52 = vld [vmem:[%s0 + $0x7c] sm:$0xf]
  %v53 = vld [vmem:[%s0 + $0x80] sm:$0xf]
  %v54 = vld [vmem:[%s0 + $0x84] sm:$0xf]
  %v55 = vld [vmem:[%s0 + $0x88] sm:$0xf]
  %v56 = vld [vmem:[%s0 + $0x8c] sm:$0xf]
  %v57 = vld [vmem:[%s0 + $0x90] sm:$0xf]
  %v58 = vld [vmem:[%s0 + $0x94] sm:$0xf]
  %v59 = vld [vmem:[%s0 + $0x98] sm:$0xf]
  %v60 = vld [vmem:[%s0 + $0x9c] sm:$0xf]
  %v61 = vld [vmem:[%s0 + $0xa0] sm:$0xf]
  %v62 = vld [vmem:[%s0 + $0xa4] sm:$0xf]
  %v63 = vld [vmem:[%s0 + $0xa8] sm:$0xf]
  %v64 = vld [vmem:[%s0 + $0xac] sm:$0xf]
  %v65 = vld [vmem:[%s0 + $0xb0] sm:$0xf]
  %v66 = vld [vmem:[%s0 + $0xb4] sm:$0xf]
  %v67 = vld [vmem:[%s0 + $0xb8] sm:$0xf]
  %v68 = vld [vmem:[%s0 + $0xbc] sm:$0xf]
  %v69 = vld [vmem:[%s0 + $0xc0] sm:$0xf]
  %v70 = vld [vmem:[%s0 + $0xc4] sm:$0xf]
  %v71 = vld [vmem:[%s0 + $0xc8] sm:$0xf]
  %v72 = vld [vmem:[%s0 + $0xcc] sm:$0xf]
  %v73 = vld [vmem:[%s0 + $0xd0] sm:$0xf]
  %v74 = vld [vmem:[%s0 + $0xd4] sm:$0xf]
  %v75 = vld [vmem:[%s0 + $0xd8] sm:$0xf]
  %v76 = vld [vmem:[%s0 + $0xdc] sm:$0xf]
  %v77 = vld [vmem:[%s0 + $0xe0] sm:$0xf]
  %v78 = vld [vmem:[%s0 + $0xe4] sm:$0xf]
  %v79 = vld [vmem:[%s0 + $0xe8] sm:$0xf]
  %v80 = vld [vmem:[%s0 + $0xec] sm:$0xf]
  %v81 = vld [vmem:[%s0 + $0xf0] sm:$0xf]
  %v82 = vld [vmem:[%s0 + $0xf4] sm:$0xf]
  %v83 = vld [vmem:[%s0 + $0xf8] sm:$0xf]
  %v84 = vld [vmem:[%s0 + $0xfc] sm:$0xf]
  %v85 = vld [vmem:[%s1] sm:$0xf]
  %v86 = vld [vmem:[%s1 + $0x4] sm:$0xf]
  %v87 = vld [vmem:[%s1 + $0x8] sm:$0xf]
  %v88 = vld [vmem:[%s1 + $0xc] sm:$0xf]
  %v89 = vld [vmem:[%s1 + $0x10] sm:$0xf]
  %v90 = vld [vmem:[%s1 + $0x14] sm:$0xf]
  %v91 = vld [vmem:[%s1 + $0x18] sm:$0xf]
  %v92 = vld [vmem:[%s1 + $0x1c] sm:$0xf]
  %v93 = vld [vmem:[%s1 + $0x20] sm:$0xf]
  %v94 = vld [vmem:[%s1 + $0x24] sm:$0xf]
  %v95 = vld [vmem:[%s1 + $0x28] sm:$0xf]
  %v96 = vld [vmem:[%s1 + $0x2c] sm:$0xf]
  %v97 = vld [vmem:[%s1 + $0x30] sm:$0xf]
  %v98 = vld [vmem:[%s1 + $0x34] sm:$0xf]
  %v99 = vld [vmem:[%s1 + $0x38] sm:$0xf]
  %v100 = vld [vmem:[%s1 + $0x3c] sm:$0xf]
  %v165 = vunpack.c.l.b16 %v21
  %v166 = vunpack.c.l.b16 %v22
  %v167 = vunpack.c.l.b16 %v23
  %v168 = vunpack.c.l.b16 %v24
  %v169 = vunpack.c.l.b16 %v25
  %v170 = vunpack.c.l.b16 %v26
  %v171 = vunpack.c.l.b16 %v27
  %v172 = vunpack.c.l.b16 %v28
  %v173 = vunpack.c.l.b16 %v29
  %v174 = vunpack.c.l.b16 %v30
  %v175 = vunpack.c.l.b16 %v31
  %v176 = vunpack.c.l.b16 %v32
  %v177 = vunpack.c.l.b16 %v33
  %v178 = vunpack.c.l.b16 %v34
  %v179 = vunpack.c.l.b16 %v35
  %v180 = vunpack.c.l.b16 %v36
  %v181 = vunpack.c.l.b16 %v37
  %v182 = vunpack.c.l.b16 %v38
  %v183 = vunpack.c.l.b16 %v39
  %v184 = vunpack.c.l.b16 %v40
  %v185 = vunpack.c.l.b16 %v41
  %v186 = vunpack.c.l.b16 %v42
  %v187 = vunpack.c.l.b16 %v43
  %v188 = vunpack.c.l.b16 %v44
  %v189 = vunpack.c.l.b16 %v45
  %v190 = vunpack.c.l.b16 %v46
  %v191 = vunpack.c.l.b16 %v47
  %v192 = vunpack.c.l.b16 %v48
  %v193 = vunpack.c.l.b16 %v49
  %v194 = vunpack.c.l.b16 %v50
  %v195 = vunpack.c.l.b16 %v51
  %v196 = vunpack.c.l.b16 %v52
  %v197 = vunpack.c.l.b16 %v53
  %v198 = vunpack.c.l.b16 %v54
  %v199 = vunpack.c.l.b16 %v55
  %v200 = vunpack.c.l.b16 %v56
  %v201 = vunpack.c.l.b16 %v57
  %v202 = vunpack.c.l.b16 %v58
  %v203 = vunpack.c.l.b16 %v59
  %v204 = vunpack.c.l.b16 %v60
  %v205 = vunpack.c.l.b16 %v61
  %v206 = vunpack.c.l.b16 %v62
  %v207 = vunpack.c.l.b16 %v63
  %v208 = vunpack.c.l.b16 %v64
  %v209 = vunpack.c.l.b16 %v65
  %v210 = vunpack.c.l.b16 %v66
  %v211 = vunpack.c.l.b16 %v67
  %v212 = vunpack.c.l.b16 %v68
  %v213 = vunpack.c.l.b16 %v69
  %v214 = vunpack.c.l.b16 %v70
  %v215 = vunpack.c.l.b16 %v71
  %v216 = vunpack.c.l.b16 %v72
  %v217 = vunpack.c.l.b16 %v73
  %v218 = vunpack.c.l.b16 %v74
  %v219 = vunpack.c.l.b16 %v75
  %v220 = vunpack.c.l.b16 %v76
  %v221 = vunpack.c.l.b16 %v77
  %v222 = vunpack.c.l.b16 %v78
  %v223 = vunpack.c.l.b16 %v79
  %v224 = vunpack.c.l.b16 %v80
  %v225 = vunpack.c.l.b16 %v81
  %v226 = vunpack.c.l.b16 %v82
  %v227 = vunpack.c.l.b16 %v83
  %v228 = vunpack.c.l.b16 %v84
  %v229 = vpack.c.b16 %v166, %v165
  %v230 = vpack.c.b16 %v168, %v167
  %v231 = vpack.c.b16 %v170, %v169
  %v232 = vpack.c.b16 %v172, %v171
  %v233 = vpack.c.b16 %v174, %v173
  %v234 = vpack.c.b16 %v176, %v175
  %v235 = vpack.c.b16 %v178, %v177
  %v236 = vpack.c.b16 %v180, %v179
  %v237 = vpack.c.b16 %v182, %v181
  %v238 = vpack.c.b16 %v184, %v183
  %v239 = vpack.c.b16 %v186, %v185
  %v240 = vpack.c.b16 %v188, %v187
  %v241 = vpack.c.b16 %v190, %v189
  %v242 = vpack.c.b16 %v192, %v191
  %v243 = vpack.c.b16 %v194, %v193
  %v244 = vpack.c.b16 %v196, %v195
  %v245 = vpack.c.b16 %v198, %v197
  %v246 = vpack.c.b16 %v200, %v199
  %v247 = vpack.c.b16 %v202, %v201
  %v248 = vpack.c.b16 %v204, %v203
  %v249 = vpack.c.b16 %v206, %v205
  %v250 = vpack.c.b16 %v208, %v207
  %v251 = vpack.c.b16 %v210, %v209
  %v252 = vpack.c.b16 %v212, %v211
  %v253 = vpack.c.b16 %v214, %v213
  %v254 = vpack.c.b16 %v216, %v215
  %v255 = vpack.c.b16 %v218, %v217
  %v256 = vpack.c.b16 %v220, %v219
  %v257 = vpack.c.b16 %v222, %v221
  %v258 = vpack.c.b16 %v224, %v223
  %v259 = vpack.c.b16 %v226, %v225
  %v260 = vpack.c.b16 %v228, %v227
  %v309 = vunpack.c.l.b16 %v85
  %v310 = vunpack.c.l.b16 %v86
  %v311 = vunpack.c.l.b16 %v87
  %v312 = vunpack.c.l.b16 %v88
  %v313 = vunpack.c.l.b16 %v89
  %v314 = vunpack.c.l.b16 %v90
  %v315 = vunpack.c.l.b16 %v91
  %v316 = vunpack.c.l.b16 %v92
  %v317 = vunpack.c.l.b16 %v93
  %v318 = vunpack.c.l.b16 %v94
  %v319 = vunpack.c.l.b16 %v95
  %v320 = vunpack.c.l.b16 %v96
  %v321 = vunpack.c.l.b16 %v97
  %v322 = vunpack.c.l.b16 %v98
  %v323 = vunpack.c.l.b16 %v99
  %v324 = vunpack.c.l.b16 %v100
  %v325 = vpack.c.b16 %v310, %v309
  %v326 = vpack.c.b16 %v312, %v311
  %v327 = vpack.c.b16 %v314, %v313
  %v328 = vpack.c.b16 %v316, %v315
  %v329 = vpack.c.b16 %v318, %v317
  %v330 = vpack.c.b16 %v320, %v319
  %v331 = vpack.c.b16 %v322, %v321
  %v332 = vpack.c.b16 %v324, %v323
  %341 = vmatprep.subr.bf16.mxu0 0
  %342 = vmatpush1.bf16.msra.mxu0 %v325
  %343 = vmatprep.subr.bf16.mxu0 0
  %344 = vmatpush1.bf16.msra.mxu0 %v326
  %345 = vmatprep.subr.bf16.mxu0 0
  %346 = vmatpush1.bf16.msra.mxu0 %v327
  %347 = vmatprep.subr.bf16.mxu0 0
  %348 = vmatpush1.bf16.msra.mxu0 %v328
  %349 = vmatprep.subr.bf16.mxu0 0
  %350 = vmatpush1.bf16.msra.mxu0 %v329
  %351 = vmatprep.subr.bf16.mxu0 0
  %352 = vmatpush1.bf16.msra.mxu0 %v330
  %353 = vmatprep.subr.bf16.mxu0 0
  %354 = vmatpush1.bf16.msra.mxu0 %v331
  %355 = vmatprep.subr.bf16.mxu0 0
  %356 = vmatpush1.bf16.msra.mxu0 %v332
  %357 = vmatprep.subr.bf16.mxu0 0
  %358 = vmatpush1.bf16.msra.mxu0 0
  %359 = vmatprep.subr.bf16.mxu0 0
  %360 = vmatpush1.bf16.msra.mxu0 0
  %361 = vmatprep.subr.bf16.mxu0 0
  %362 = vmatpush1.bf16.msra.mxu0 0
  %363 = vmatprep.subr.bf16.mxu0 0
  %364 = vmatpush1.bf16.msra.mxu0 0
  %365 = vmatprep.subr.bf16.mxu0 0
  %366 = vmatpush1.bf16.msra.mxu0 0
  %367 = vmatprep.subr.bf16.mxu0 0
  %368 = vmatpush1.bf16.msra.mxu0 0
  %369 = vmatprep.subr.bf16.mxu0 0
  %370 = vmatpush1.bf16.msra.mxu0 0
  %371 = vmatprep.subr.bf16.mxu0 0
  %372 = vmatpush1.bf16.msra.mxu0 0
  %373 = vmatprep.mubr.bf16.mxu0 0
  %374 = vmatmul.mubr.bf16.gmra.mrb[0].mxu0 %v229
  %v375 = vpop.f32.mrb[0].mxu0
  %v376 = vadd.f32 0.0, %v375
  %v377 = vpop.f32.mrb[0].mxu0
  %v378 = vpop.f32.mrb[0].mxu0
  %v379 = vadd.f32 0.0, %v378
  %v380 = vpop.f32.mrb[0].mxu0
  %381 = vmatprep.mubr.bf16.mxu0 0
  %382 = vmatmul.mubr.bf16.gmra.mrb[0].mxu0 %v230
  %v383 = vpop.f32.mrb[0].mxu0
  %v384 = vadd.f32 0.0, %v383
  %v385 = vpop.f32.mrb[0].mxu0
  %v386 = vpop.f32.mrb[0].mxu0
  %v387 = vadd.f32 0.0, %v386
  %v388 = vpop.f32.mrb[0].mxu0
  %389 = vmatprep.mubr.bf16.mxu0 0
  %390 = vmatmul.mubr.bf16.gmra.mrb[0].mxu0 %v231
  %v391 = vpop.f32.mrb[0].mxu0
  %v392 = vadd.f32 0.0, %v391
  %v393 = vpop.f32.mrb[0].mxu0
  %v394 = vpop.f32.mrb[0].mxu0
  %v395 = vadd.f32 0.0, %v394
  %v396 = vpop.f32.mrb[0].mxu0
  %397 = vmatprep.mubr.bf16.mxu0 0
  %398 = vmatmul.mubr.bf16.gmra.mrb[0].mxu0 %v232
  %v399 = vpop.f32.mrb[0].mxu0
  %v400 = vadd.f32 0.0, %v399
  %v401 = vpop.f32.mrb[0].mxu0
  %v402 = vpop.f32.mrb[0].mxu0
  %v403 = vadd.f32 0.0, %v402
  %v404 = vpop.f32.mrb[0].mxu0
  %405 = vmatprep.mubr.bf16.mxu0 0
  %406 = vmatmul.mubr.bf16.gmra.mrb[0].mxu0 %v233
  %v407 = vpop.f32.mrb[0].mxu0
  %v408 = vadd.f32 0.0, %v407
  %v409 = vpop.f32.mrb[0].mxu0
  %v410 = vpop.f32.mrb[0].mxu0
  %v411 = vadd.f32 0.0, %v410
  %v412 = vpop.f32.mrb[0].mxu0
  %413 = vmatprep.mubr.bf16.mxu0 0
  %414 = vmatmul.mubr.bf16.gmra.mrb[0].mxu0 %v234
  %v415 = vpop.f32.mrb[0].mxu0
  %v416 = vadd.f32 0.0, %v415
  %v417 = vpop.f32.mrb[0].mxu0
  %v418 = vpop.f32.mrb[0].mxu0
  %v419 = vadd.f32 0.0, %v418
  %v420 = vpop.f32.mrb[0].mxu0
  %421 = vmatprep.mubr.bf16.mxu0 0
  %422 = vmatmul.mubr.bf16.gmra.mrb[0].mxu0 %v235
  %v423 = vpop.f32.mrb[0].mxu0
  %v424 = vadd.f32 0.0, %v423
  %v425 = vpop.f32.mrb[0].mxu0
  %v426 = vpop.f32.mrb[0].mxu0
  %v427 = vadd.f32 0.0, %v426
  %v428 = vpop.f32.mrb[0].mxu0
  %429 = vmatprep.mubr.bf16.mxu0 0
  %430 = vmatmul.mubr.bf16.gmra.mrb[0].mxu0 %v236
  %v431 = vpop.f32.mrb[0].mxu0
  %v432 = vadd.f32 0.0, %v431
  %v433 = vpop.f32.mrb[0].mxu0
  %v434 = vpop.f32.mrb[0].mxu0
  %v435 = vadd.f32 0.0, %v434
  %v436 = vpop.f32.mrb[0].mxu0
  %437 = vmatprep.mubr.bf16.mxu0 0
  %438 = vmatmul.mubr.bf16.gmra.mrb[0].mxu0 %v237
  %v439 = vpop.f32.mrb[0].mxu0
  %v440 = vadd.f32 0.0, %v439
  %v441 = vpop.f32.mrb[0].mxu0
  %v442 = vpop.f32.mrb[0].mxu0
  %v443 = vadd.f32 0.0, %v442
  %v444 = vpop.f32.mrb[0].mxu0
  %445 = vmatprep.mubr.bf16.mxu0 0
  %446 = vmatmul.mubr.bf16.gmra.mrb[0].mxu0 %v238
  %v447 = vpop.f32.mrb[0].mxu0
  %v448 = vadd.f32 0.0, %v447
  %v449 = vpop.f32.mrb[0].mxu0
  %v450 = vpop.f32.mrb[0].mxu0
  %v451 = vadd.f32 0.0, %v450
  %v452 = vpop.f32.mrb[0].mxu0
  %453 = vmatprep.mubr.bf16.mxu0 0
  %454 = vmatmul.mubr.bf16.gmra.mrb[0].mxu0 %v239
  %v455 = vpop.f32.mrb[0].mxu0
  %v456 = vadd.f32 0.0, %v455
  %v457 = vpop.f32.mrb[0].mxu0
  %v458 = vpop.f32.mrb[0].mxu0
  %v459 = vadd.f32 0.0, %v458
  %v460 = vpop.f32.mrb[0].mxu0
  %461 = vmatprep.mubr.bf16.mxu0 0
  %462 = vmatmul.mubr.bf16.gmra.mrb[0].mxu0 %v240
  %v463 = vpop.f32.mrb[0].mxu0
  %v464 = vadd.f32 0.0, %v463
  %v465 = vpop.f32.mrb[0].mxu0
  %v466 = vpop.f32.mrb[0].mxu0
  %v467 = vadd.f32 0.0, %v466
  %v468 = vpop.f32.mrb[0].mxu0
  %469 = vmatprep.mubr.bf16.mxu0 0
  %470 = vmatmul.mubr.bf16.gmra.mrb[0].mxu0 %v241
  %v471 = vpop.f32.mrb[0].mxu0
  %v472 = vadd.f32 0.0, %v471
  %v473 = vpop.f32.mrb[0].mxu0
  %v474 = vpop.f32.mrb[0].mxu0
  %v475 = vadd.f32 0.0, %v474
  %v476 = vpop.f32.mrb[0].mxu0
  %477 = vmatprep.mubr.bf16.mxu0 0
  %478 = vmatmul.mubr.bf16.gmra.mrb[0].mxu0 %v242
  %v479 = vpop.f32.mrb[0].mxu0
  %v480 = vadd.f32 0.0, %v479
  %v481 = vpop.f32.mrb[0].mxu0
  %v482 = vpop.f32.mrb[0].mxu0
  %v483 = vadd.f32 0.0, %v482
  %v484 = vpop.f32.mrb[0].mxu0
  %485 = vmatprep.mubr.bf16.mxu0 0
  %486 = vmatmul.mubr.bf16.gmra.mrb[0].mxu0 %v243
  %v487 = vpop.f32.mrb[0].mxu0
  %v488 = vadd.f32 0.0, %v487
  %v489 = vpop.f32.mrb[0].mxu0
  %v490 = vpop.f32.mrb[0].mxu0
  %v491 = vadd.f32 0.0, %v490
  %v492 = vpop.f32.mrb[0].mxu0
  %493 = vmatprep.mubr.bf16.mxu0 0
  %494 = vmatmul.mubr.bf16.gmra.mrb[0].mxu0 %v244
  %v495 = vpop.f32.mrb[0].mxu0
  %v496 = vadd.f32 0.0, %v495
  %v497 = vpop.f32.mrb[0].mxu0
  %v498 = vpop.f32.mrb[0].mxu0
  %v499 = vadd.f32 0.0, %v498
  %v500 = vpop.f32.mrb[0].mxu0
  %501 = vmatprep.mubr.bf16.mxu0 0
  %502 = vmatmul.mubr.bf16.gmra.mrb[0].mxu0 %v245
  %v503 = vpop.f32.mrb[0].mxu0
  %v504 = vadd.f32 0.0, %v503
  %v505 = vpop.f32.mrb[0].mxu0
  %v506 = vpop.f32.mrb[0].mxu0
  %v507 = vadd.f32 0.0, %v506
  %v508 = vpop.f32.mrb[0].mxu0
  %509 = vmatprep.mubr.bf16.mxu0 0
  %510 = vmatmul.mubr.bf16.gmra.mrb[0].mxu0 %v246
  %v511 = vpop.f32.mrb[0].mxu0
  %v512 = vadd.f32 0.0, %v511
  %v513 = vpop.f32.mrb[0].mxu0
  %v514 = vpop.f32.mrb[0].mxu0
  %v515 = vadd.f32 0.0, %v514
  %v516 = vpop.f32.mrb[0].mxu0
  %517 = vmatprep.mubr.bf16.mxu0 0
  %518 = vmatmul.mubr.bf16.gmra.mrb[0].mxu0 %v247
  %v519 = vpop.f32.mrb[0].mxu0
  %v520 = vadd.f32 0.0, %v519
  %v521 = vpop.f32.mrb[0].mxu0
  %v522 = vpop.f32.mrb[0].mxu0
  %v523 = vadd.f32 0.0, %v522
  %v524 = vpop.f32.mrb[0].mxu0
  %525 = vmatprep.mubr.bf16.mxu0 0
  %526 = vmatmul.mubr.bf16.gmra.mrb[0].mxu0 %v248
  %v527 = vpop.f32.mrb[0].mxu0
  %v528 = vadd.f32 0.0, %v527
  %v529 = vpop.f32.mrb[0].mxu0
  %v530 = vpop.f32.mrb[0].mxu0
  %v531 = vadd.f32 0.0, %v530
  %v532 = vpop.f32.mrb[0].mxu0
  %533 = vmatprep.mubr.bf16.mxu0 0
  %534 = vmatmul.mubr.bf16.gmra.mrb[0].mxu0 %v249
  %v535 = vpop.f32.mrb[0].mxu0
  %v536 = vadd.f32 0.0, %v535
  %v537 = vpop.f32.mrb[0].mxu0
  %v538 = vpop.f32.mrb[0].mxu0
  %v539 = vadd.f32 0.0, %v538
  %v540 = vpop.f32.mrb[0].mxu0
  %541 = vmatprep.mubr.bf16.mxu0 0
  %542 = vmatmul.mubr.bf16.gmra.mrb[0].mxu0 %v250
  %v543 = vpop.f32.mrb[0].mxu0
  %v544 = vadd.f32 0.0, %v543
  %v545 = vpop.f32.mrb[0].mxu0
  %v546 = vpop.f32.mrb[0].mxu0
  %v547 = vadd.f32 0.0, %v546
  %v548 = vpop.f32.mrb[0].mxu0
  %549 = vmatprep.mubr.bf16.mxu0 0
  %550 = vmatmul.mubr.bf16.gmra.mrb[0].mxu0 %v251
  %v551 = vpop.f32.mrb[0].mxu0
  %v552 = vadd.f32 0.0, %v551
  %v553 = vpop.f32.mrb[0].mxu0
  %v554 = vpop.f32.mrb[0].mxu0
  %v555 = vadd.f32 0.0, %v554
  %v556 = vpop.f32.mrb[0].mxu0
  %557 = vmatprep.mubr.bf16.mxu0 0
  %558 = vmatmul.mubr.bf16.gmra.mrb[0].mxu0 %v252
  %v559 = vpop.f32.mrb[0].mxu0
  %v560 = vadd.f32 0.0, %v559
  %v561 = vpop.f32.mrb[0].mxu0
  %v562 = vpop.f32.mrb[0].mxu0
  %v563 = vadd.f32 0.0, %v562
  %v564 = vpop.f32.mrb[0].mxu0
  %565 = vmatprep.mubr.bf16.mxu0 0
  %566 = vmatmul.mubr.bf16.gmra.mrb[0].mxu0 %v253
  %v567 = vpop.f32.mrb[0].mxu0
  %v568 = vadd.f32 0.0, %v567
  %v569 = vpop.f32.mrb[0].mxu0
  %v570 = vpop.f32.mrb[0].mxu0
  %v571 = vadd.f32 0.0, %v570
  %v572 = vpop.f32.mrb[0].mxu0
  %573 = vmatprep.mubr.bf16.mxu0 0
  %574 = vmatmul.mubr.bf16.gmra.mrb[0].mxu0 %v254
  %v575 = vpop.f32.mrb[0].mxu0
  %v576 = vadd.f32 0.0, %v575
  %v577 = vpop.f32.mrb[0].mxu0
  %v578 = vpop.f32.mrb[0].mxu0
  %v579 = vadd.f32 0.0, %v578
  %v580 = vpop.f32.mrb[0].mxu0
  %581 = vmatprep.mubr.bf16.mxu0 0
  %582 = vmatmul.mubr.bf16.gmra.mrb[0].mxu0 %v255
  %v583 = vpop.f32.mrb[0].mxu0
  %v584 = vadd.f32 0.0, %v583
  %v585 = vpop.f32.mrb[0].mxu0
  %v586 = vpop.f32.mrb[0].mxu0
  %v587 = vadd.f32 0.0, %v586
  %v588 = vpop.f32.mrb[0].mxu0
  %589 = vmatprep.mubr.bf16.mxu0 0
  %590 = vmatmul.mubr.bf16.gmra.mrb[0].mxu0 %v256
  %v591 = vpop.f32.mrb[0].mxu0
  %v592 = vadd.f32 0.0, %v591
  %v593 = vpop.f32.mrb[0].mxu0
  %v594 = vpop.f32.mrb[0].mxu0
  %v595 = vadd.f32 0.0, %v594
  %v596 = vpop.f32.mrb[0].mxu0
  %597 = vmatprep.mubr.bf16.mxu0 0
  %598 = vmatmul.mubr.bf16.gmra.mrb[0].mxu0 %v257
  %v599 = vpop.f32.mrb[0].mxu0
  %v600 = vadd.f32 0.0, %v599
  %v601 = vpop.f32.mrb[0].mxu0
  %v602 = vpop.f32.mrb[0].mxu0
  %v603 = vadd.f32 0.0, %v602
  %v604 = vpop.f32.mrb[0].mxu0
  %605 = vmatprep.mubr.bf16.mxu0 0
  %606 = vmatmul.mubr.bf16.gmra.mrb[0].mxu0 %v258
  %v607 = vpop.f32.mrb[0].mxu0
  %v608 = vadd.f32 0.0, %v607
  %v609 = vpop.f32.mrb[0].mxu0
  %v610 = vpop.f32.mrb[0].mxu0
  %v611 = vadd.f32 0.0, %v610
  %v612 = vpop.f32.mrb[0].mxu0
  %613 = vmatprep.mubr.bf16.mxu0 0
  %614 = vmatmul.mubr.bf16.gmra.mrb[0].mxu0 %v259
  %v615 = vpop.f32.mrb[0].mxu0
  %v616 = vadd.f32 0.0, %v615
  %v617 = vpop.f32.mrb[0].mxu0
  %v618 = vpop.f32.mrb[0].mxu0
  %v619 = vadd.f32 0.0, %v618
  %v620 = vpop.f32.mrb[0].mxu0
  %621 = vmatprep.mubr.bf16.mxu0 0
  %622 = vmatmul.mubr.bf16.gmra.mrb[0].mxu0 %v260
  %v623 = vpop.f32.mrb[0].mxu0
  %v624 = vadd.f32 0.0, %v623
  %v625 = vpop.f32.mrb[0].mxu0
  %v626 = vpop.f32.mrb[0].mxu0
  %v627 = vadd.f32 0.0, %v626
  %v628 = vpop.f32.mrb[0].mxu0
  %629 = vdwg.mxu0
  %v630 = vadd.f32 %v376, %v379
  %v631 = vadd.f32 %v630, %v384
  %v632 = vadd.f32 %v631, %v387
  %v633 = vadd.f32 %v632, %v392
  %v634 = vadd.f32 %v633, %v395
  %v635 = vadd.f32 %v634, %v400
  %v636 = vadd.f32 %v635, %v403
  %v637 = vadd.f32 %v636, %v408
  %v638 = vadd.f32 %v637, %v411
  %v639 = vadd.f32 %v638, %v416
  %v640 = vadd.f32 %v639, %v419
  %v641 = vadd.f32 %v640, %v424
  %v642 = vadd.f32 %v641, %v427
  %v643 = vadd.f32 %v642, %v432
  %v644 = vadd.f32 %v643, %v435
  %v645 = vadd.f32 %v644, %v440
  %v646 = vadd.f32 %v645, %v443
  %v647 = vadd.f32 %v646, %v448
  %v648 = vadd.f32 %v647, %v451
  %v649 = vadd.f32 %v648, %v456
  %v650 = vadd.f32 %v649, %v459
  %v651 = vadd.f32 %v650, %v464
  %v652 = vadd.f32 %v651, %v467
  %v653 = vadd.f32 %v652, %v472
  %v654 = vadd.f32 %v653, %v475
  %v655 = vadd.f32 %v654, %v480
  %v656 = vadd.f32 %v655, %v483
  %v657 = vadd.f32 %v656, %v488
  %v658 = vadd.f32 %v657, %v491
  %v659 = vadd.f32 %v658, %v496
  %v660 = vadd.f32 %v659, %v499
  %v661 = vadd.f32 %v660, %v504
  %v662 = vadd.f32 %v661, %v507
  %v663 = vadd.f32 %v662, %v512
  %v664 = vadd.f32 %v663, %v515
  %v665 = vadd.f32 %v664, %v520
  %v666 = vadd.f32 %v665, %v523
  %v667 = vadd.f32 %v666, %v528
  %v668 = vadd.f32 %v667, %v531
  %v669 = vadd.f32 %v668, %v536
  %v670 = vadd.f32 %v669, %v539
  %v671 = vadd.f32 %v670, %v544
  %v672 = vadd.f32 %v671, %v547
  %v673 = vadd.f32 %v672, %v552
  %v674 = vadd.f32 %v673, %v555
  %v675 = vadd.f32 %v674, %v560
  %v676 = vadd.f32 %v675, %v563
  %v677 = vadd.f32 %v676, %v568
  %v678 = vadd.f32 %v677, %v571
  %v679 = vadd.f32 %v678, %v576
  %v680 = vadd.f32 %v679, %v579
  %v681 = vadd.f32 %v680, %v584
  %v682 = vadd.f32 %v681, %v587
  %v683 = vadd.f32 %v682, %v592
  %v684 = vadd.f32 %v683, %v595
  %v685 = vadd.f32 %v684, %v600
  %v686 = vadd.f32 %v685, %v603
  %v687 = vadd.f32 %v686, %v608
  %v688 = vadd.f32 %v687, %v611
  %v689 = vadd.f32 %v688, %v616
  %v690 = vadd.f32 %v689, %v619
  %v691 = vadd.f32 %v690, %v624
  %v692 = vadd.f32 %v691, %v627
  %v693 = vrot.slane %v692, 4
  %v694 = vadd.f32 %v692, %v693
  %v695 = vrot.slane %v694, 2
  %v696 = vadd.f32 %v694, %v695
  %v697 = vrot.slane %v696, 1
  %v698 = vadd.f32 %v696, %v697
  %v699 = vmul.f32 %v376, %v376
  %v700 = vmul.f32 %v379, %v379
  %v701 = vmul.f32 %v384, %v384
  %v702 = vmul.f32 %v387, %v387
  %v703 = vmul.f32 %v392, %v392
  %v704 = vmul.f32 %v395, %v395
  %v705 = vmul.f32 %v400, %v400
  %v706 = vmul.f32 %v403, %v403
  %v707 = vmul.f32 %v408, %v408
  %v708 = vmul.f32 %v411, %v411
  %v709 = vmul.f32 %v416, %v416
  %v710 = vmul.f32 %v419, %v419
  %v711 = vmul.f32 %v424, %v424
  %v712 = vmul.f32 %v427, %v427
  %v713 = vmul.f32 %v432, %v432
  %v714 = vmul.f32 %v435, %v435
  %v715 = vmul.f32 %v440, %v440
  %v716 = vmul.f32 %v443, %v443
  %v717 = vmul.f32 %v448, %v448
  %v718 = vmul.f32 %v451, %v451
  %v719 = vmul.f32 %v456, %v456
  %v720 = vmul.f32 %v459, %v459
  %v721 = vmul.f32 %v464, %v464
  %v722 = vmul.f32 %v467, %v467
  %v723 = vmul.f32 %v472, %v472
  %v724 = vmul.f32 %v475, %v475
  %v725 = vmul.f32 %v480, %v480
  %v726 = vmul.f32 %v483, %v483
  %v727 = vmul.f32 %v488, %v488
  %v728 = vmul.f32 %v491, %v491
  %v729 = vmul.f32 %v496, %v496
  %v730 = vmul.f32 %v499, %v499
  %v731 = vmul.f32 %v504, %v504
  %v732 = vmul.f32 %v507, %v507
  %v733 = vmul.f32 %v512, %v512
  %v734 = vmul.f32 %v515, %v515
  %v735 = vmul.f32 %v520, %v520
  %v736 = vmul.f32 %v523, %v523
  %v737 = vmul.f32 %v528, %v528
  %v738 = vmul.f32 %v531, %v531
  %v739 = vmul.f32 %v536, %v536
  %v740 = vmul.f32 %v539, %v539
  %v741 = vmul.f32 %v544, %v544
  %v742 = vmul.f32 %v547, %v547
  %v743 = vmul.f32 %v552, %v552
  %v744 = vmul.f32 %v555, %v555
  %v745 = vmul.f32 %v560, %v560
  %v746 = vmul.f32 %v563, %v563
  %v747 = vmul.f32 %v568, %v568
  %v748 = vmul.f32 %v571, %v571
  %v749 = vmul.f32 %v576, %v576
  %v750 = vmul.f32 %v579, %v579
  %v751 = vmul.f32 %v584, %v584
  %v752 = vmul.f32 %v587, %v587
  %v753 = vmul.f32 %v592, %v592
  %v754 = vmul.f32 %v595, %v595
  %v755 = vmul.f32 %v600, %v600
  %v756 = vmul.f32 %v603, %v603
  %v757 = vmul.f32 %v608, %v608
  %v758 = vmul.f32 %v611, %v611
  %v759 = vmul.f32 %v616, %v616
  %v760 = vmul.f32 %v619, %v619
  %v761 = vmul.f32 %v624, %v624
  %v762 = vmul.f32 %v627, %v627
  %v763 = vadd.f32 %v699, %v700
  %v764 = vadd.f32 %v763, %v701
  %v765 = vadd.f32 %v764, %v702
  %v766 = vadd.f32 %v765, %v703
  %v767 = vadd.f32 %v766, %v704
  %v768 = vadd.f32 %v767, %v705
  %v769 = vadd.f32 %v768, %v706
  %v770 = vadd.f32 %v769, %v707
  %v771 = vadd.f32 %v770, %v708
  %v772 = vadd.f32 %v771, %v709
  %v773 = vadd.f32 %v772, %v710
  %v774 = vadd.f32 %v773, %v711
  %v775 = vadd.f32 %v774, %v712
  %v776 = vadd.f32 %v775, %v713
  %v777 = vadd.f32 %v776, %v714
  %v778 = vadd.f32 %v777, %v715
  %v779 = vadd.f32 %v778, %v716
  %v780 = vadd.f32 %v779, %v717
  %v781 = vadd.f32 %v780, %v718
  %v782 = vadd.f32 %v781, %v719
  %v783 = vadd.f32 %v782, %v720
  %v784 = vadd.f32 %v783, %v721
  %v785 = vadd.f32 %v784, %v722
  %v786 = vadd.f32 %v785, %v723
  %v787 = vadd.f32 %v786, %v724
  %v788 = vadd.f32 %v787, %v725
  %v789 = vadd.f32 %v788, %v726
  %v790 = vadd.f32 %v789, %v727
  %v791 = vadd.f32 %v790, %v728
  %v792 = vadd.f32 %v791, %v729
  %v793 = vadd.f32 %v792, %v730
  %v794 = vadd.f32 %v793, %v731
  %v795 = vadd.f32 %v794, %v732
  %v796 = vadd.f32 %v795, %v733
  %v797 = vadd.f32 %v796, %v734
  %v798 = vadd.f32 %v797, %v735
  %v799 = vadd.f32 %v798, %v736
  %v800 = vadd.f32 %v799, %v737
  %v801 = vadd.f32 %v800, %v738
  %v802 = vadd.f32 %v801, %v739
  %v803 = vadd.f32 %v802, %v740
  %v804 = vadd.f32 %v803, %v741
  %v805 = vadd.f32 %v804, %v742
  %v806 = vadd.f32 %v805, %v743
  %v807 = vadd.f32 %v806, %v744
  %v808 = vadd.f32 %v807, %v745
  %v809 = vadd.f32 %v808, %v746
  %v810 = vadd.f32 %v809, %v747
  %v811 = vadd.f32 %v810, %v748
  %v812 = vadd.f32 %v811, %v749
  %v813 = vadd.f32 %v812, %v750
  %v814 = vadd.f32 %v813, %v751
  %v815 = vadd.f32 %v814, %v752
  %v816 = vadd.f32 %v815, %v753
  %v817 = vadd.f32 %v816, %v754
  %v818 = vadd.f32 %v817, %v755
  %v819 = vadd.f32 %v818, %v756
  %v820 = vadd.f32 %v819, %v757
  %v821 = vadd.f32 %v820, %v758
  %v822 = vadd.f32 %v821, %v759
  %v823 = vadd.f32 %v822, %v760
  %v824 = vadd.f32 %v823, %v761
  %v825 = vadd.f32 %v824, %v762
  %v826 = vrot.slane %v825, 4
  %v827 = vadd.f32 %v825, %v826
  %v828 = vrot.slane %v827, 2
  %v829 = vadd.f32 %v827, %v828
  %v830 = vrot.slane %v829, 1
  %v831 = vadd.f32 %v829, %v830
  %v832 = vld [vmem:[%s2] sm:$0x1]
  %v833 = vld [vmem:[%s3] sm:$0x1]
  %v834 = vmul.f32 %v698, 0.001953125
  %v835 = vmul.f32 %v831, 0.001953125
  %v836 = vmul.f32 %v834, %v834
  %v837 = vsub.f32 %v835, %v836
  %v838 = vmax.f32 %v837, 0.0
  %v839 = vadd.f32 %v838, 1e-05
  %v840 = vrsqrt.pop %v839
  %v841 = vmul.f32 %v832, %v840
  %v842 = vmul.f32 %v834, %v841
  %v843 = vsub.f32 %v833, %v842
  %v845 = vlaneseq
  %v846 = vshrl.u32 %v845, 7
  %v847 = vsub.s32 0, %v846
  %v848 = vrot.slane %v841, %v847
  %v850 = vmul.f32 %v376, %v848
  %v851 = vmul.f32 %v379, %v848
  %v852 = vmul.f32 %v384, %v848
  %v853 = vmul.f32 %v387, %v848
  %v854 = vmul.f32 %v392, %v848
  %v855 = vmul.f32 %v395, %v848
  %v856 = vmul.f32 %v400, %v848
  %v857 = vmul.f32 %v403, %v848
  %v858 = vmul.f32 %v408, %v848
  %v859 = vmul.f32 %v411, %v848
  %v860 = vmul.f32 %v416, %v848
  %v861 = vmul.f32 %v419, %v848
  %v862 = vmul.f32 %v424, %v848
  %v863 = vmul.f32 %v427, %v848
  %v864 = vmul.f32 %v432, %v848
  %v865 = vmul.f32 %v435, %v848
  %v866 = vmul.f32 %v440, %v848
  %v867 = vmul.f32 %v443, %v848
  %v868 = vmul.f32 %v448, %v848
  %v869 = vmul.f32 %v451, %v848
  %v870 = vmul.f32 %v456, %v848
  %v871 = vmul.f32 %v459, %v848
  %v872 = vmul.f32 %v464, %v848
  %v873 = vmul.f32 %v467, %v848
  %v874 = vmul.f32 %v472, %v848
  %v875 = vmul.f32 %v475, %v848
  %v876 = vmul.f32 %v480, %v848
  %v877 = vmul.f32 %v483, %v848
  %v878 = vmul.f32 %v488, %v848
  %v879 = vmul.f32 %v491, %v848
  %v880 = vmul.f32 %v496, %v848
  %v881 = vmul.f32 %v499, %v848
  %v882 = vmul.f32 %v504, %v848
  %v883 = vmul.f32 %v507, %v848
  %v884 = vmul.f32 %v512, %v848
  %v885 = vmul.f32 %v515, %v848
  %v886 = vmul.f32 %v520, %v848
  %v887 = vmul.f32 %v523, %v848
  %v888 = vmul.f32 %v528, %v848
  %v889 = vmul.f32 %v531, %v848
  %v890 = vmul.f32 %v536, %v848
  %v891 = vmul.f32 %v539, %v848
  %v892 = vmul.f32 %v544, %v848
  %v893 = vmul.f32 %v547, %v848
  %v894 = vmul.f32 %v552, %v848
  %v895 = vmul.f32 %v555, %v848
  %v896 = vmul.f32 %v560, %v848
  %v897 = vmul.f32 %v563, %v848
  %v898 = vmul.f32 %v568, %v848
  %v899 = vmul.f32 %v571, %v848
  %v900 = vmul.f32 %v576, %v848
  %v901 = vmul.f32 %v579, %v848
  %v902 = vmul.f32 %v584, %v848
  %v903 = vmul.f32 %v587, %v848
  %v904 = vmul.f32 %v592, %v848
  %v905 = vmul.f32 %v595, %v848
  %v906 = vmul.f32 %v600, %v848
  %v907 = vmul.f32 %v603, %v848
  %v908 = vmul.f32 %v608, %v848
  %v909 = vmul.f32 %v611, %v848
  %v910 = vmul.f32 %v616, %v848
  %v911 = vmul.f32 %v619, %v848
  %v912 = vmul.f32 %v624, %v848
  %v913 = vmul.f32 %v627, %v848
  %v915 = vlaneseq
  %v916 = vshrl.u32 %v915, 7
  %v917 = vsub.s32 0, %v916
  %v918 = vrot.slane %v843, %v917
  %v920 = vadd.f32 %v850, %v918
  %v921 = vadd.f32 %v851, %v918
  %v922 = vadd.f32 %v852, %v918
  %v923 = vadd.f32 %v853, %v918
  %v924 = vadd.f32 %v854, %v918
  %v925 = vadd.f32 %v855, %v918
  %v926 = vadd.f32 %v856, %v918
  %v927 = vadd.f32 %v857, %v918
  %v928 = vadd.f32 %v858, %v918
  %v929 = vadd.f32 %v859, %v918
  %v930 = vadd.f32 %v860, %v918
  %v931 = vadd.f32 %v861, %v918
  %v932 = vadd.f32 %v862, %v918
  %v933 = vadd.f32 %v863, %v918
  %v934 = vadd.f32 %v864, %v918
  %v935 = vadd.f32 %v865, %v918
  %v936 = vadd.f32 %v866, %v918
  %v937 = vadd.f32 %v867, %v918
  %v938 = vadd.f32 %v868, %v918
  %v939 = vadd.f32 %v869, %v918
  %v940 = vadd.f32 %v870, %v918
  %v941 = vadd.f32 %v871, %v918
  %v942 = vadd.f32 %v872, %v918
  %v943 = vadd.f32 %v873, %v918
  %v944 = vadd.f32 %v874, %v918
  %v945 = vadd.f32 %v875, %v918
  %v946 = vadd.f32 %v876, %v918
  %v947 = vadd.f32 %v877, %v918
  %v948 = vadd.f32 %v878, %v918
  %v949 = vadd.f32 %v879, %v918
  %v950 = vadd.f32 %v880, %v918
  %v951 = vadd.f32 %v881, %v918
  %v952 = vadd.f32 %v882, %v918
  %v953 = vadd.f32 %v883, %v918
  %v954 = vadd.f32 %v884, %v918
  %v955 = vadd.f32 %v885, %v918
  %v956 = vadd.f32 %v886, %v918
  %v957 = vadd.f32 %v887, %v918
  %v958 = vadd.f32 %v888, %v918
  %v959 = vadd.f32 %v889, %v918
  %v960 = vadd.f32 %v890, %v918
  %v961 = vadd.f32 %v891, %v918
  %v962 = vadd.f32 %v892, %v918
  %v963 = vadd.f32 %v893, %v918
  %v964 = vadd.f32 %v894, %v918
  %v965 = vadd.f32 %v895, %v918
  %v966 = vadd.f32 %v896, %v918
  %v967 = vadd.f32 %v897, %v918
  %v968 = vadd.f32 %v898, %v918
  %v969 = vadd.f32 %v899, %v918
  %v970 = vadd.f32 %v900, %v918
  %v971 = vadd.f32 %v901, %v918
  %v972 = vadd.f32 %v902, %v918
  %v973 = vadd.f32 %v903, %v918
  %v974 = vadd.f32 %v904, %v918
  %v975 = vadd.f32 %v905, %v918
  %v976 = vadd.f32 %v906, %v918
  %v977 = vadd.f32 %v907, %v918
  %v978 = vadd.f32 %v908, %v918
  %v979 = vadd.f32 %v909, %v918
  %v980 = vadd.f32 %v910, %v918
  %v981 = vadd.f32 %v911, %v918
  %v982 = vadd.f32 %v912, %v918
  %v983 = vadd.f32 %v913, %v918
  %v984 = vld [vmem:[%s4] sm:$0xff]
  %v985 = vld [vmem:[%s4 + $0x8] sm:$0xff]
  %v986 = vld [vmem:[%s4 + $0x10] sm:$0xff]
  %v987 = vld [vmem:[%s4 + $0x18] sm:$0xff]
  %v988 = vld [vmem:[%s4 + $0x20] sm:$0xff]
  %v989 = vld [vmem:[%s4 + $0x28] sm:$0xff]
  %v990 = vld [vmem:[%s4 + $0x30] sm:$0xff]
  %v991 = vld [vmem:[%s4 + $0x38] sm:$0xff]
  %v992 = vld [vmem:[%s4 + $0x40] sm:$0xff]
  %v993 = vld [vmem:[%s4 + $0x48] sm:$0xff]
  %v994 = vld [vmem:[%s4 + $0x50] sm:$0xff]
  %v995 = vld [vmem:[%s4 + $0x58] sm:$0xff]
  %v996 = vld [vmem:[%s4 + $0x60] sm:$0xff]
  %v997 = vld [vmem:[%s4 + $0x68] sm:$0xff]
  %v998 = vld [vmem:[%s4 + $0x70] sm:$0xff]
  %v999 = vld [vmem:[%s4 + $0x78] sm:$0xff]
  %v1000 = vld [vmem:[%s4 + $0x80] sm:$0xff]
  %v1001 = vld [vmem:[%s4 + $0x88] sm:$0xff]
  %v1002 = vld [vmem:[%s4 + $0x90] sm:$0xff]
  %v1003 = vld [vmem:[%s4 + $0x98] sm:$0xff]
  %v1004 = vld [vmem:[%s4 + $0xa0] sm:$0xff]
  %v1005 = vld [vmem:[%s4 + $0xa8] sm:$0xff]
  %v1006 = vld [vmem:[%s4 + $0xb0] sm:$0xff]
  %v1007 = vld [vmem:[%s4 + $0xb8] sm:$0xff]
  %v1008 = vld [vmem:[%s4 + $0xc0] sm:$0xff]
  %v1009 = vld [vmem:[%s4 + $0xc8] sm:$0xff]
  %v1010 = vld [vmem:[%s4 + $0xd0] sm:$0xff]
  %v1011 = vld [vmem:[%s4 + $0xd8] sm:$0xff]
  %v1012 = vld [vmem:[%s4 + $0xe0] sm:$0xff]
  %v1013 = vld [vmem:[%s4 + $0xe8] sm:$0xff]
  %v1014 = vld [vmem:[%s4 + $0xf0] sm:$0xff]
  %v1015 = vld [vmem:[%s4 + $0xf8] sm:$0xff]
  %v1016 = vld [vmem:[%s4 + $0x100] sm:$0xff]
  %v1017 = vld [vmem:[%s4 + $0x108] sm:$0xff]
  %v1018 = vld [vmem:[%s4 + $0x110] sm:$0xff]
  %v1019 = vld [vmem:[%s4 + $0x118] sm:$0xff]
  %v1020 = vld [vmem:[%s4 + $0x120] sm:$0xff]
  %v1021 = vld [vmem:[%s4 + $0x128] sm:$0xff]
  %v1022 = vld [vmem:[%s4 + $0x130] sm:$0xff]
  %v1023 = vld [vmem:[%s4 + $0x138] sm:$0xff]
  %v1024 = vld [vmem:[%s4 + $0x140] sm:$0xff]
  %v1025 = vld [vmem:[%s4 + $0x148] sm:$0xff]
  %v1026 = vld [vmem:[%s4 + $0x150] sm:$0xff]
  %v1027 = vld [vmem:[%s4 + $0x158] sm:$0xff]
  %v1028 = vld [vmem:[%s4 + $0x160] sm:$0xff]
  %v1029 = vld [vmem:[%s4 + $0x168] sm:$0xff]
  %v1030 = vld [vmem:[%s4 + $0x170] sm:$0xff]
  %v1031 = vld [vmem:[%s4 + $0x178] sm:$0xff]
  %v1032 = vld [vmem:[%s4 + $0x180] sm:$0xff]
  %v1033 = vld [vmem:[%s4 + $0x188] sm:$0xff]
  %v1034 = vld [vmem:[%s4 + $0x190] sm:$0xff]
  %v1035 = vld [vmem:[%s4 + $0x198] sm:$0xff]
  %v1036 = vld [vmem:[%s4 + $0x1a0] sm:$0xff]
  %v1037 = vld [vmem:[%s4 + $0x1a8] sm:$0xff]
  %v1038 = vld [vmem:[%s4 + $0x1b0] sm:$0xff]
  %v1039 = vld [vmem:[%s4 + $0x1b8] sm:$0xff]
  %v1040 = vld [vmem:[%s4 + $0x1c0] sm:$0xff]
  %v1041 = vld [vmem:[%s4 + $0x1c8] sm:$0xff]
  %v1042 = vld [vmem:[%s4 + $0x1d0] sm:$0xff]
  %v1043 = vld [vmem:[%s4 + $0x1d8] sm:$0xff]
  %v1044 = vld [vmem:[%s4 + $0x1e0] sm:$0xff]
  %v1045 = vld [vmem:[%s4 + $0x1e8] sm:$0xff]
  %v1046 = vld [vmem:[%s4 + $0x1f0] sm:$0xff]
  %v1047 = vld [vmem:[%s4 + $0x1f8] sm:$0xff]
  %v1048 = vadd.f32 %v920, %v984
  %v1049 = vadd.f32 %v921, %v985
  %v1050 = vadd.f32 %v922, %v986
  %v1051 = vadd.f32 %v923, %v987
  %v1052 = vadd.f32 %v924, %v988
  %v1053 = vadd.f32 %v925, %v989
  %v1054 = vadd.f32 %v926, %v990
  %v1055 = vadd.f32 %v927, %v991
  %v1056 = vadd.f32 %v928, %v992
  %v1057 = vadd.f32 %v929, %v993
  %v1058 = vadd.f32 %v930, %v994
  %v1059 = vadd.f32 %v931, %v995
  %v1060 = vadd.f32 %v932, %v996
  %v1061 = vadd.f32 %v933, %v997
  %v1062 = vadd.f32 %v934, %v998
  %v1063 = vadd.f32 %v935, %v999
  %v1064 = vadd.f32 %v936, %v1000
  %v1065 = vadd.f32 %v937, %v1001
  %v1066 = vadd.f32 %v938, %v1002
  %v1067 = vadd.f32 %v939, %v1003
  %v1068 = vadd.f32 %v940, %v1004
  %v1069 = vadd.f32 %v941, %v1005
  %v1070 = vadd.f32 %v942, %v1006
  %v1071 = vadd.f32 %v943, %v1007
  %v1072 = vadd.f32 %v944, %v1008
  %v1073 = vadd.f32 %v945, %v1009
  %v1074 = vadd.f32 %v946, %v1010
  %v1075 = vadd.f32 %v947, %v1011
  %v1076 = vadd.f32 %v948, %v1012
  %v1077 = vadd.f32 %v949, %v1013
  %v1078 = vadd.f32 %v950, %v1014
  %v1079 = vadd.f32 %v951, %v1015
  %v1080 = vadd.f32 %v952, %v1016
  %v1081 = vadd.f32 %v953, %v1017
  %v1082 = vadd.f32 %v954, %v1018
  %v1083 = vadd.f32 %v955, %v1019
  %v1084 = vadd.f32 %v956, %v1020
  %v1085 = vadd.f32 %v957, %v1021
  %v1086 = vadd.f32 %v958, %v1022
  %v1087 = vadd.f32 %v959, %v1023
  %v1088 = vadd.f32 %v960, %v1024
  %v1089 = vadd.f32 %v961, %v1025
  %v1090 = vadd.f32 %v962, %v1026
  %v1091 = vadd.f32 %v963, %v1027
  %v1092 = vadd.f32 %v964, %v1028
  %v1093 = vadd.f32 %v965, %v1029
  %v1094 = vadd.f32 %v966, %v1030
  %v1095 = vadd.f32 %v967, %v1031
  %v1096 = vadd.f32 %v968, %v1032
  %v1097 = vadd.f32 %v969, %v1033
  %v1098 = vadd.f32 %v970, %v1034
  %v1099 = vadd.f32 %v971, %v1035
  %v1100 = vadd.f32 %v972, %v1036
  %v1101 = vadd.f32 %v973, %v1037
  %v1102 = vadd.f32 %v974, %v1038
  %v1103 = vadd.f32 %v975, %v1039
  %v1104 = vadd.f32 %v976, %v1040
  %v1105 = vadd.f32 %v977, %v1041
  %v1106 = vadd.f32 %v978, %v1042
  %v1107 = vadd.f32 %v979, %v1043
  %v1108 = vadd.f32 %v980, %v1044
  %v1109 = vadd.f32 %v981, %v1045
  %v1110 = vadd.f32 %v982, %v1046
  %v1111 = vadd.f32 %v983, %v1047
  %v1112 = vmax.f32 %v1048, 0.0
  %v1113 = vmax.f32 %v1049, 0.0
  %v1114 = vmax.f32 %v1050, 0.0
  %v1115 = vmax.f32 %v1051, 0.0
  %v1116 = vmax.f32 %v1052, 0.0
  %v1117 = vmax.f32 %v1053, 0.0
  %v1118 = vmax.f32 %v1054, 0.0
  %v1119 = vmax.f32 %v1055, 0.0
  %v1120 = vmax.f32 %v1056, 0.0
  %v1121 = vmax.f32 %v1057, 0.0
  %v1122 = vmax.f32 %v1058, 0.0
  %v1123 = vmax.f32 %v1059, 0.0
  %v1124 = vmax.f32 %v1060, 0.0
  %v1125 = vmax.f32 %v1061, 0.0
  %v1126 = vmax.f32 %v1062, 0.0
  %v1127 = vmax.f32 %v1063, 0.0
  %v1128 = vmax.f32 %v1064, 0.0
  %v1129 = vmax.f32 %v1065, 0.0
  %v1130 = vmax.f32 %v1066, 0.0
  %v1131 = vmax.f32 %v1067, 0.0
  %v1132 = vmax.f32 %v1068, 0.0
  %v1133 = vmax.f32 %v1069, 0.0
  %v1134 = vmax.f32 %v1070, 0.0
  %v1135 = vmax.f32 %v1071, 0.0
  %v1136 = vmax.f32 %v1072, 0.0
  %v1137 = vmax.f32 %v1073, 0.0
  %v1138 = vmax.f32 %v1074, 0.0
  %v1139 = vmax.f32 %v1075, 0.0
  %v1140 = vmax.f32 %v1076, 0.0
  %v1141 = vmax.f32 %v1077, 0.0
  %v1142 = vmax.f32 %v1078, 0.0
  %v1143 = vmax.f32 %v1079, 0.0
  %v1144 = vmax.f32 %v1080, 0.0
  %v1145 = vmax.f32 %v1081, 0.0
  %v1146 = vmax.f32 %v1082, 0.0
  %v1147 = vmax.f32 %v1083, 0.0
  %v1148 = vmax.f32 %v1084, 0.0
  %v1149 = vmax.f32 %v1085, 0.0
  %v1150 = vmax.f32 %v1086, 0.0
  %v1151 = vmax.f32 %v1087, 0.0
  %v1152 = vmax.f32 %v1088, 0.0
  %v1153 = vmax.f32 %v1089, 0.0
  %v1154 = vmax.f32 %v1090, 0.0
  %v1155 = vmax.f32 %v1091, 0.0
  %v1156 = vmax.f32 %v1092, 0.0
  %v1157 = vmax.f32 %v1093, 0.0
  %v1158 = vmax.f32 %v1094, 0.0
  %v1159 = vmax.f32 %v1095, 0.0
  %v1160 = vmax.f32 %v1096, 0.0
  %v1161 = vmax.f32 %v1097, 0.0
  %v1162 = vmax.f32 %v1098, 0.0
  %v1163 = vmax.f32 %v1099, 0.0
  %v1164 = vmax.f32 %v1100, 0.0
  %v1165 = vmax.f32 %v1101, 0.0
  %v1166 = vmax.f32 %v1102, 0.0
  %v1167 = vmax.f32 %v1103, 0.0
  %v1168 = vmax.f32 %v1104, 0.0
  %v1169 = vmax.f32 %v1105, 0.0
  %v1170 = vmax.f32 %v1106, 0.0
  %v1171 = vmax.f32 %v1107, 0.0
  %v1172 = vmax.f32 %v1108, 0.0
  %v1173 = vmax.f32 %v1109, 0.0
  %v1174 = vmax.f32 %v1110, 0.0
  %v1175 = vmax.f32 %v1111, 0.0
  %1176 = vst [vmem:[%s5] sm:$0xff] %v1112
  %1177 = vst [vmem:[%s5 + $0x8] sm:$0xff] %v1113
  %1178 = vst [vmem:[%s5 + $0x10] sm:$0xff] %v1114
  %1179 = vst [vmem:[%s5 + $0x18] sm:$0xff] %v1115
  %1180 = vst [vmem:[%s5 + $0x20] sm:$0xff] %v1116
  %1181 = vst [vmem:[%s5 + $0x28] sm:$0xff] %v1117
  %1182 = vst [vmem:[%s5 + $0x30] sm:$0xff] %v1118
  %1183 = vst [vmem:[%s5 + $0x38] sm:$0xff] %v1119
  %1184 = vst [vmem:[%s5 + $0x40] sm:$0xff] %v1120
  %1185 = vst [vmem:[%s5 + $0x48] sm:$0xff] %v1121
  %1186 = vst [vmem:[%s5 + $0x50] sm:$0xff] %v1122
  %1187 = vst [vmem:[%s5 + $0x58] sm:$0xff] %v1123
  %1188 = vst [vmem:[%s5 + $0x60] sm:$0xff] %v1124
  %1189 = vst [vmem:[%s5 + $0x68] sm:$0xff] %v1125
  %1190 = vst [vmem:[%s5 + $0x70] sm:$0xff] %v1126
  %1191 = vst [vmem:[%s5 + $0x78] sm:$0xff] %v1127
  %1192 = vst [vmem:[%s5 + $0x80] sm:$0xff] %v1128
  %1193 = vst [vmem:[%s5 + $0x88] sm:$0xff] %v1129
  %1194 = vst [vmem:[%s5 + $0x90] sm:$0xff] %v1130
  %1195 = vst [vmem:[%s5 + $0x98] sm:$0xff] %v1131
  %1196 = vst [vmem:[%s5 + $0xa0] sm:$0xff] %v1132
  %1197 = vst [vmem:[%s5 + $0xa8] sm:$0xff] %v1133
  %1198 = vst [vmem:[%s5 + $0xb0] sm:$0xff] %v1134
  %1199 = vst [vmem:[%s5 + $0xb8] sm:$0xff] %v1135
  %1200 = vst [vmem:[%s5 + $0xc0] sm:$0xff] %v1136
  %1201 = vst [vmem:[%s5 + $0xc8] sm:$0xff] %v1137
  %1202 = vst [vmem:[%s5 + $0xd0] sm:$0xff] %v1138
  %1203 = vst [vmem:[%s5 + $0xd8] sm:$0xff] %v1139
  %1204 = vst [vmem:[%s5 + $0xe0] sm:$0xff] %v1140
  %1205 = vst [vmem:[%s5 + $0xe8] sm:$0xff] %v1141
  %1206 = vst [vmem:[%s5 + $0xf0] sm:$0xff] %v1142
  %1207 = vst [vmem:[%s5 + $0xf8] sm:$0xff] %v1143
  %1208 = vst [vmem:[%s5 + $0x100] sm:$0xff] %v1144
  %1209 = vst [vmem:[%s5 + $0x108] sm:$0xff] %v1145
  %1210 = vst [vmem:[%s5 + $0x110] sm:$0xff] %v1146
  %1211 = vst [vmem:[%s5 + $0x118] sm:$0xff] %v1147
  %1212 = vst [vmem:[%s5 + $0x120] sm:$0xff] %v1148
  %1213 = vst [vmem:[%s5 + $0x128] sm:$0xff] %v1149
  %1214 = vst [vmem:[%s5 + $0x130] sm:$0xff] %v1150
  %1215 = vst [vmem:[%s5 + $0x138] sm:$0xff] %v1151
  %1216 = vst [vmem:[%s5 + $0x140] sm:$0xff] %v1152
  %1217 = vst [vmem:[%s5 + $0x148] sm:$0xff] %v1153
  %1218 = vst [vmem:[%s5 + $0x150] sm:$0xff] %v1154
  %1219 = vst [vmem:[%s5 + $0x158] sm:$0xff] %v1155
  %1220 = vst [vmem:[%s5 + $0x160] sm:$0xff] %v1156
  %1221 = vst [vmem:[%s5 + $0x168] sm:$0xff] %v1157
  %1222 = vst [vmem:[%s5 + $0x170] sm:$0xff] %v1158
  %1223 = vst [vmem:[%s5 + $0x178] sm:$0xff] %v1159
  %1224 = vst [vmem:[%s5 + $0x180] sm:$0xff] %v1160
  %1225 = vst [vmem:[%s5 + $0x188] sm:$0xff] %v1161
  %1226 = vst [vmem:[%s5 + $0x190] sm:$0xff] %v1162
  %1227 = vst [vmem:[%s5 + $0x198] sm:$0xff] %v1163
  %1228 = vst [vmem:[%s5 + $0x1a0] sm:$0xff] %v1164
  %1229 = vst [vmem:[%s5 + $0x1a8] sm:$0xff] %v1165
  %1230 = vst [vmem:[%s5 + $0x1b0] sm:$0xff] %v1166
  %1231 = vst [vmem:[%s5 + $0x1b8] sm:$0xff] %v1167
  %1232 = vst [vmem:[%s5 + $0x1c0] sm:$0xff] %v1168
  %1233 = vst [vmem:[%s5 + $0x1c8] sm:$0xff] %v1169
  %1234 = vst [vmem:[%s5 + $0x1d0] sm:$0xff] %v1170
  %1235 = vst [vmem:[%s5 + $0x1d8] sm:$0xff] %v1171
  %1236 = vst [vmem:[%s5 + $0x1e0] sm:$0xff] %v1172
  %1237 = vst [vmem:[%s5 + $0x1e8] sm:$0xff] %v1173
  %1238 = vst [vmem:[%s5 + $0x1f0] sm:$0xff] %v1174
  %1239 = vst [vmem:[%s5 + $0x1f8] sm:$0xff] %v1175
  // Predicated region
  $region22: #{bottleneck_identify_psp.5} parent=0 // pred_check
    _
  $region23: #{bottleneck_identify_psp.5} parent=0 // pred_check_branch
    %1241 = sbr.rel (0) target = $region25
  $region24: #{bottleneck_identify_psp.5} parent=0 // pred_region
    _
  $region25: #{bottleneck_identify_psp.5} parent=0 // pred_fallthru
    _
  // Predicated region
  $region26: #{bottleneck_identify_psp.5} parent=0 // pred_check
    _
  $region27: #{bottleneck_identify_psp.5} parent=0 // pred_check_branch
    %1243 = sbr.rel (0) target = $region29
  $region28: #{bottleneck_identify_psp.5} parent=0 // pred_region
    _
  $region29: #{bottleneck_identify_psp.5} parent=0 // pred_fallthru
    _

</llo_original>
